<compile_context>
chip_gen: v6e
topology: v6e:2x2x1
jax: 0.10.0
libtpu: 0.0.40
codegen_flags: <defaults>
</compile_context>

<pallas_src>
import numpy as np
import jax
import jax.numpy as jnp
from jax import lax
from jax.experimental import pallas as pl

# ----- static configuration -----
N, C, H, W = 2, 4, 16, 16          # input x: (N, C, H, W)  (NCHW, like PyTorch)
C_OUT = 8                          # out_channels
EXP = 4                            # expansion_ratio
HID = EXP * C                      # 16
K = 7                              # kernel_size
PAD = K // 2                       # 3
HO, WO = 2 * H - 1, 2 * W - 1      # 31x31: ConvTranspose(stride=2, pad=3, k=7) output
H_OUT, W_OUT = 2 * H, 2 * W        # 32x32 after F.pad(..., (1, 0, 1, 0))
EPS = 1e-5                         # nn.GroupNorm default eps
INV_SQRT2 = 0.7071067811865476

NC = N * C                         # 8   folded (n, c) rows on sublanes
NHID = N * HID                     # 32
NCO = N * C_OUT                    # 16  folded output rows

# phase-packed flat grid: 4 phases x (16x16) = 1024 lanes (8 lane tiles)
PH_GRID = 16
SLAB = PH_GRID * PH_GRID           # 256 lanes per phase slab (2 aligned vreg cols)
NPHASE = 4
SFLAT = NPHASE * SLAB              # 1024
NTAP = 16                          # 4x4 (dh, dw) im2col windows
NVALID = HO * WO                   # 961 valid positions for GroupNorm stats

# Polyphase tap map for ConvTranspose(k=7, s=2, p=3): output parity ph, window
# row offset dh (into xp[j] = x[j-1], zero halo) -> kernel row kh.
KH_MAP = ({0: 5, 1: 3, 2: 1},          # even output rows: 3 taps
          {0: 6, 1: 4, 2: 2, 3: 0})    # odd  output rows: 4 taps


def _phase_taps():
    taps = []                      # per window t = dh*4+dw: phases that use it
    for dh in range(4):
        for dw in range(4):
            ps = []
            for ph in range(2):
                for pw in range(2):
                    if dh in KH_MAP[ph] and dw in KH_MAP[pw]:
                        ps.append(ph * 2 + pw)
            taps.append(ps)
    return taps


PHASE_TAPS = _phase_taps()         # 49 real taps total across the 4 phases


def _mednext_up_kernel(win_ref, mask_ref, wt_ref, bdw_ref, gamma_ref, beta_ref,
                       w2_ref, b2_ref, w3r_ref, b3r_ref, out_ref):
    mask = mask_ref[...]                       # (1, SFLAT) valid 31x31 positions
    wt = wt_ref[...]                           # (NC, 64)   polyphase depthwise taps

    # ---- conv1: depthwise ConvTranspose2d(k=7, s=2, p=3, groups=C), polyphase --
    # 16 aligned (NC, 256) window loads, 49 weighted FMAs into 4 phase slabs.
    accs = [jnp.zeros((NC, SLAB), jnp.float32) for _ in range(NPHASE)]
    for t in range(NTAP):
        w_win = win_ref[t]                     # (NC, SLAB) fully aligned tile
        for p in PHASE_TAPS[t]:
            c0 = p * NTAP + t
            accs[p] = accs[p] + w_win * wt[:, c0:c0 + 1]
    z = jnp.concatenate(accs, axis=1)          # (NC, SFLAT) phase-packed
    z = (z + bdw_ref[...]) * mask              # bias; zero the 63 invalid lanes

    # ---- GroupNorm(num_groups=C): folded to one per-(n,c) scale/shift ----------
    inv_n = 1.0 / float(NVALID)
    mean = jnp.sum(z, axis=1, keepdims=True) * inv_n
    ex2 = jnp.sum(z * z, axis=1, keepdims=True) * inv_n
    a = gamma_ref[...] * lax.rsqrt(ex2 - mean * mean + EPS)
    b = beta_ref[...] - mean * a
    xn = z * a + b

    # ---- conv2: 1x1 expand (C -> 4C) block-diagonal MXU matmul + exact-erf GELU
    h = jnp.dot(w2_ref[...], xn, preferred_element_type=jnp.float32) + b2_ref[...]
    h = 0.5 * h * (1.0 + lax.erf(h * INV_SQRT2))

    # ---- conv3 (1x1, 4C->C_OUT) + res_conv (1x1 ConvTranspose, s=2) fused ------
    # Residual touches only phase (0,0) (even/even outputs); its RHS rows are the
    # original x, available for free as im2col window (dh=1, dw=1).
    xc0 = win_ref[5]                           # (NC, SLAB): x on the 16x16 grid
    xc = jnp.concatenate(
        [xc0, jnp.zeros((NC, SFLAT - SLAB), jnp.float32)], axis=1)
    rhs = jnp.concatenate([h, xc], axis=0)     # (NHID + NC, SFLAT)
    y = jnp.dot(w3r_ref[...], rhs, preferred_element_type=jnp.float32) + b3r_ref[...]

    out_ref[...] = y                           # single dense, unmasked store


def mednext_up_block(x_nchw, p):
    """Forward pass. x_nchw: (N, C, H, W) -> (N, C_OUT, 2H, 2W)."""
    xf = x_nchw.astype(jnp.float32).reshape(NC, H, W)       # fold (n, c) -> rows

    # im2col of the zero-halo-padded ORIGINAL input (pure data movement):
    # 16 windows, each an aligned (NC, 256) tile.  Window t=(dh,dw) holds
    # xp[r+dh, s+dw] with xp[j] = x[j-1] (zero halo rows/cols -1, 16, 17).
    xp = jnp.pad(xf, ((0, 0), (1, 2), (1, 2)))              # (NC, 19, 19)
    win = jnp.stack(
        [xp[:, dh:dh + PH_GRID, dw:dw + PH_GRID].reshape(NC, SLAB)
         for dh in range(4) for dw in range(4)], axis=0)    # (16, NC, 256)

    # polyphase depthwise tap table (NC, 64); zero where a phase has no tap
    kh_idx = np.zeros(NPHASE * NTAP, np.int32)
    kw_idx = np.zeros(NPHASE * NTAP, np.int32)
    valid = np.zeros(NPHASE * NTAP, np.float32)
    for ph in range(2):
        for pw in range(2):
            for dh in range(4):
                for dw in range(4):
                    col = (ph * 2 + pw) * NTAP + dh * 4 + dw
                    if dh in KH_MAP[ph] and dw in KH_MAP[pw]:
                        kh_idx[col] = KH_MAP[ph][dh]
                        kw_idx[col] = KH_MAP[pw][dw]
                        valid[col] = 1.0
    wt = jnp.tile(p["wdw"][:, kh_idx, kw_idx] * valid, (N, 1))      # (NC, 64)

    # mask of the 961 valid (31x31) positions inside the 4x(16x16) phase packing
    idx = np.arange(PH_GRID)
    m = []
    for ph in range(2):
        for pw in range(2):
            mr = (2 * idx + ph <= HO - 1)[:, None]
            ms = (2 * idx + pw <= WO - 1)[None, :]
            m.append((mr & ms).astype(np.float32).reshape(-1))
    mask = jnp.asarray(np.concatenate(m))[None, :]                  # (1, SFLAT)

    col = lambda v: jnp.tile(v, N).reshape(-1, 1)          # per-row column vecs
    eye_n = jnp.eye(N, dtype=jnp.float32)
    w3r = jnp.concatenate([jnp.kron(eye_n, p["w3"]),                # (NCO, NHID)
                           jnp.kron(eye_n, p["wres"].T)], axis=1)   # (NCO, NC)
    args = (
        win, mask, wt,
        col(p["bdw"]), col(p["gn_w"]), col(p["gn_b"]),
        jnp.kron(eye_n, p["w2"]), col(p["b2"]),                     # (NHID, NC)
        w3r, col(p["b3"] + p["bres"]),                              # fused bias
    )

    out_flat = pl.pallas_call(
        _mednext_up_kernel,
        out_shape=jax.ShapeDtypeStruct((NCO, SFLAT), jnp.float32),
    )(*args)

    # de-interleave phases to the 31x31 grid, apply F.pad((1, 0, 1, 0)) (glue)
    y = out_flat.reshape(N, C_OUT, 2, 2, PH_GRID, PH_GRID)          # (n,o,ph,pw,r,s)
    y = jnp.transpose(y, (0, 1, 4, 2, 5, 3)).reshape(N, C_OUT, H_OUT, W_OUT)
    return jnp.pad(y[:, :, :HO, :WO], ((0, 0), (0, 0), (1, 0), (1, 0)))


def init_params(key):
    ks = jax.random.split(key, 10)
    s = 0.2
    return dict(
        wdw=jax.random.normal(ks[0], (C, K, K), jnp.float32) * s,   # ConvT (C,1,7,7) squeezed
        bdw=jax.random.normal(ks[1], (C,), jnp.float32) * s,
        gn_w=1.0 + jax.random.normal(ks[2], (C,), jnp.float32) * 0.1,
        gn_b=jax.random.normal(ks[3], (C,), jnp.float32) * 0.1,
        w2=jax.random.normal(ks[4], (HID, C), jnp.float32) * s,     # Conv2d 1x1 (out,in)
        b2=jax.random.normal(ks[5], (HID,), jnp.float32) * s,
        w3=jax.random.normal(ks[6], (C_OUT, HID), jnp.float32) * s, # Conv2d 1x1 (out,in)
        b3=jax.random.normal(ks[7], (C_OUT,), jnp.float32) * s,
        wres=jax.random.normal(ks[8], (C, C_OUT), jnp.float32) * s, # ConvT 1x1 (in,out)
        bres=jax.random.normal(ks[9], (C_OUT,), jnp.float32) * s,
    )


def reference(x, p):
    """Pure-JAX (XLA) reference of the PyTorch forward, for validation."""
    hp = lax.Precision.HIGHEST
    wf = p["wdw"][:, ::-1, ::-1][:, None, :, :]              # (C,1,K,K) OIHW, depthwise
    x1 = lax.conv_general_dilated(
        x, wf, window_strides=(1, 1), padding=[(PAD, PAD), (PAD, PAD)],
        lhs_dilation=(2, 2), rhs_dilation=(1, 1),
        dimension_numbers=("NCHW", "OIHW", "NCHW"),
        feature_group_count=C, precision=hp)
    x1 = x1 + p["bdw"][None, :, None, None]
    mean = x1.mean(axis=(2, 3), keepdims=True)
    var = ((x1 - mean) ** 2).mean(axis=(2, 3), keepdims=True)
    x1 = (x1 - mean) * lax.rsqrt(var + EPS)
    x1 = x1 * p["gn_w"][None, :, None, None] + p["gn_b"][None, :, None, None]
    h = jnp.einsum("nchw,oc->nohw", x1, p["w2"], precision=hp) + p["b2"][None, :, None, None]
    h = 0.5 * h * (1.0 + lax.erf(h * INV_SQRT2))
    y = jnp.einsum("nchw,oc->nohw", h, p["w3"], precision=hp) + p["b3"][None, :, None, None]
    y = jnp.pad(y, ((0, 0), (0, 0), (1, 0), (1, 0)))
    wres = jnp.transpose(p["wres"], (1, 0))[:, :, None, None]  # OIHW
    res = lax.conv_general_dilated(
        x, wres, window_strides=(1, 1), padding=[(0, 0), (0, 0)],
        lhs_dilation=(2, 2), dimension_numbers=("NCHW", "OIHW", "NCHW"),
        precision=hp)
    res = res + p["bres"][None, :, None, None]
    res = jnp.pad(res, ((0, 0), (0, 0), (1, 0), (1, 0)))
    return y + res


if __name__ == "__main__":
    key = jax.random.PRNGKey(0)
    kx, kp = jax.random.split(key)
    x = jax.random.normal(kx, (N, C, H, W), jnp.float32)
    params = init_params(kp)

    out = mednext_up_block(x, params)
    out = jax.block_until_ready(out)
    assert out.shape == (N, C_OUT, H_OUT, W_OUT), out.shape

    ref = reference(x, params)
    if not bool(jnp.allclose(out, ref, atol=1e-3, rtol=1e-3)):
        raise AssertionError(
            f"mismatch vs reference, max abs err = {float(jnp.max(jnp.abs(out - ref)))}")
    print("KERNEL_OK")
</pallas_src>

<mosaic_0001>
module attributes {stable_mosaic.version = 11 : i64} {
  func.func @_mednext_up_kernel(%arg0: memref<16x8x256xf32, #tpu.memory_space<vmem>>, %arg1: memref<1x1024xf32, #tpu.memory_space<vmem>>, %arg2: memref<8x64xf32, #tpu.memory_space<vmem>>, %arg3: memref<8x1xf32, #tpu.memory_space<vmem>>, %arg4: memref<8x1xf32, #tpu.memory_space<vmem>>, %arg5: memref<8x1xf32, #tpu.memory_space<vmem>>, %arg6: memref<32x8xf32, #tpu.memory_space<vmem>>, %arg7: memref<32x1xf32, #tpu.memory_space<vmem>>, %arg8: memref<16x40xf32, #tpu.memory_space<vmem>>, %arg9: memref<16x1xf32, #tpu.memory_space<vmem>>, %arg10: memref<16x1024xf32, #tpu.memory_space<vmem>>) attributes {dimension_semantics = [], scalar_prefetch = 0 : i64, scratch_operands = 0 : i64, tpu.core_type = #tpu.core_type<tc>} {
    %c0 = arith.constant 0 : index
    %c0_0 = arith.constant 0 : index
    %0 = vector.load %arg1[%c0, %c0_0] : memref<1x1024xf32, #tpu.memory_space<vmem>>, vector<1x1024xf32>
    %c0_1 = arith.constant 0 : index
    %c0_2 = arith.constant 0 : index
    %1 = vector.load %arg2[%c0_1, %c0_2] : memref<8x64xf32, #tpu.memory_space<vmem>>, vector<8x64xf32>
    %cst = arith.constant 0.000000e+00 : f32
    %2 = vector.broadcast %cst : f32 to vector<8x256xf32>
    %cst_3 = arith.constant 0.000000e+00 : f32
    %3 = vector.broadcast %cst_3 : f32 to vector<8x256xf32>
    %cst_4 = arith.constant 0.000000e+00 : f32
    %4 = vector.broadcast %cst_4 : f32 to vector<8x256xf32>
    %cst_5 = arith.constant 0.000000e+00 : f32
    %5 = vector.broadcast %cst_5 : f32 to vector<8x256xf32>
    %c0_6 = arith.constant 0 : index
    %c0_7 = arith.constant 0 : index
    %c0_8 = arith.constant 0 : index
    %6 = vector.load %arg0[%c0_6, %c0_7, %c0_8] : memref<16x8x256xf32, #tpu.memory_space<vmem>>, vector<1x8x256xf32>
    %7 = vector.shape_cast %6 : vector<1x8x256xf32> to vector<8x256xf32>
    %8 = vector.extract_strided_slice %1 {offsets = [0, 0], sizes = [8, 1], strides = [1, 1]} : vector<8x64xf32> to vector<8x1xf32>
    %9 = vector.broadcast %8 : vector<8x1xf32> to vector<8x256xf32>
    %10 = arith.mulf %7, %9 : vector<8x256xf32>
    %11 = arith.addf %2, %10 : vector<8x256xf32>
    %12 = vector.extract_strided_slice %1 {offsets = [0, 16], sizes = [8, 1], strides = [1, 1]} : vector<8x64xf32> to vector<8x1xf32>
    %13 = vector.broadcast %12 : vector<8x1xf32> to vector<8x256xf32>
    %14 = arith.mulf %7, %13 : vector<8x256xf32>
    %15 = arith.addf %3, %14 : vector<8x256xf32>
    %16 = vector.extract_strided_slice %1 {offsets = [0, 32], sizes = [8, 1], strides = [1, 1]} : vector<8x64xf32> to vector<8x1xf32>
    %17 = vector.broadcast %16 : vector<8x1xf32> to vector<8x256xf32>
    %18 = arith.mulf %7, %17 : vector<8x256xf32>
    %19 = arith.addf %4, %18 : vector<8x256xf32>
    %20 = vector.extract_strided_slice %1 {offsets = [0, 48], sizes = [8, 1], strides = [1, 1]} : vector<8x64xf32> to vector<8x1xf32>
    %21 = vector.broadcast %20 : vector<8x1xf32> to vector<8x256xf32>
    %22 = arith.mulf %7, %21 : vector<8x256xf32>
    %23 = arith.addf %5, %22 : vector<8x256xf32>
    %c1 = arith.constant 1 : index
    %c0_9 = arith.constant 0 : index
    %c0_10 = arith.constant 0 : index
    %24 = vector.load %arg0[%c1, %c0_9, %c0_10] : memref<16x8x256xf32, #tpu.memory_space<vmem>>, vector<1x8x256xf32>
    %25 = vector.shape_cast %24 : vector<1x8x256xf32> to vector<8x256xf32>
    %26 = vector.extract_strided_slice %1 {offsets = [0, 1], sizes = [8, 1], strides = [1, 1]} : vector<8x64xf32> to vector<8x1xf32>
    %27 = vector.broadcast %26 : vector<8x1xf32> to vector<8x256xf32>
    %28 = arith.mulf %25, %27 : vector<8x256xf32>
    %29 = arith.addf %11, %28 : vector<8x256xf32>
    %30 = vector.extract_strided_slice %1 {offsets = [0, 17], sizes = [8, 1], strides = [1, 1]} : vector<8x64xf32> to vector<8x1xf32>
    %31 = vector.broadcast %30 : vector<8x1xf32> to vector<8x256xf32>
    %32 = arith.mulf %25, %31 : vector<8x256xf32>
    %33 = arith.addf %15, %32 : vector<8x256xf32>
    %34 = vector.extract_strided_slice %1 {offsets = [0, 33], sizes = [8, 1], strides = [1, 1]} : vector<8x64xf32> to vector<8x1xf32>
    %35 = vector.broadcast %34 : vector<8x1xf32> to vector<8x256xf32>
    %36 = arith.mulf %25, %35 : vector<8x256xf32>
    %37 = arith.addf %19, %36 : vector<8x256xf32>
    %38 = vector.extract_strided_slice %1 {offsets = [0, 49], sizes = [8, 1], strides = [1, 1]} : vector<8x64xf32> to vector<8x1xf32>
    %39 = vector.broadcast %38 : vector<8x1xf32> to vector<8x256xf32>
    %40 = arith.mulf %25, %39 : vector<8x256xf32>
    %41 = arith.addf %23, %40 : vector<8x256xf32>
    %c2 = arith.constant 2 : index
    %c0_11 = arith.constant 0 : index
    %c0_12 = arith.constant 0 : index
    %42 = vector.load %arg0[%c2, %c0_11, %c0_12] : memref<16x8x256xf32, #tpu.memory_space<vmem>>, vector<1x8x256xf32>
    %43 = vector.shape_cast %42 : vector<1x8x256xf32> to vector<8x256xf32>
    %44 = vector.extract_strided_slice %1 {offsets = [0, 2], sizes = [8, 1], strides = [1, 1]} : vector<8x64xf32> to vector<8x1xf32>
    %45 = vector.broadcast %44 : vector<8x1xf32> to vector<8x256xf32>
    %46 = arith.mulf %43, %45 : vector<8x256xf32>
    %47 = arith.addf %29, %46 : vector<8x256xf32>
    %48 = vector.extract_strided_slice %1 {offsets = [0, 18], sizes = [8, 1], strides = [1, 1]} : vector<8x64xf32> to vector<8x1xf32>
    %49 = vector.broadcast %48 : vector<8x1xf32> to vector<8x256xf32>
    %50 = arith.mulf %43, %49 : vector<8x256xf32>
    %51 = arith.addf %33, %50 : vector<8x256xf32>
    %52 = vector.extract_strided_slice %1 {offsets = [0, 34], sizes = [8, 1], strides = [1, 1]} : vector<8x64xf32> to vector<8x1xf32>
    %53 = vector.broadcast %52 : vector<8x1xf32> to vector<8x256xf32>
    %54 = arith.mulf %43, %53 : vector<8x256xf32>
    %55 = arith.addf %37, %54 : vector<8x256xf32>
    %56 = vector.extract_strided_slice %1 {offsets = [0, 50], sizes = [8, 1], strides = [1, 1]} : vector<8x64xf32> to vector<8x1xf32>
    %57 = vector.broadcast %56 : vector<8x1xf32> to vector<8x256xf32>
    %58 = arith.mulf %43, %57 : vector<8x256xf32>
    %59 = arith.addf %41, %58 : vector<8x256xf32>
    %c3 = arith.constant 3 : index
    %c0_13 = arith.constant 0 : index
    %c0_14 = arith.constant 0 : index
    %60 = vector.load %arg0[%c3, %c0_13, %c0_14] : memref<16x8x256xf32, #tpu.memory_space<vmem>>, vector<1x8x256xf32>
    %61 = vector.shape_cast %60 : vector<1x8x256xf32> to vector<8x256xf32>
    %62 = vector.extract_strided_slice %1 {offsets = [0, 19], sizes = [8, 1], strides = [1, 1]} : vector<8x64xf32> to vector<8x1xf32>
    %63 = vector.broadcast %62 : vector<8x1xf32> to vector<8x256xf32>
    %64 = arith.mulf %61, %63 : vector<8x256xf32>
    %65 = arith.addf %51, %64 : vector<8x256xf32>
    %66 = vector.extract_strided_slice %1 {offsets = [0, 51], sizes = [8, 1], strides = [1, 1]} : vector<8x64xf32> to vector<8x1xf32>
    %67 = vector.broadcast %66 : vector<8x1xf32> to vector<8x256xf32>
    %68 = arith.mulf %61, %67 : vector<8x256xf32>
    %69 = arith.addf %59, %68 : vector<8x256xf32>
    %c4 = arith.constant 4 : index
    %c0_15 = arith.constant 0 : index
    %c0_16 = arith.constant 0 : index
    %70 = vector.load %arg0[%c4, %c0_15, %c0_16] : memref<16x8x256xf32, #tpu.memory_space<vmem>>, vector<1x8x256xf32>
    %71 = vector.shape_cast %70 : vector<1x8x256xf32> to vector<8x256xf32>
    %72 = vector.extract_strided_slice %1 {offsets = [0, 4], sizes = [8, 1], strides = [1, 1]} : vector<8x64xf32> to vector<8x1xf32>
    %73 = vector.broadcast %72 : vector<8x1xf32> to vector<8x256xf32>
    %74 = arith.mulf %71, %73 : vector<8x256xf32>
    %75 = arith.addf %47, %74 : vector<8x256xf32>
    %76 = vector.extract_strided_slice %1 {offsets = [0, 20], sizes = [8, 1], strides = [1, 1]} : vector<8x64xf32> to vector<8x1xf32>
    %77 = vector.broadcast %76 : vector<8x1xf32> to vector<8x256xf32>
    %78 = arith.mulf %71, %77 : vector<8x256xf32>
    %79 = arith.addf %65, %78 : vector<8x256xf32>
    %80 = vector.extract_strided_slice %1 {offsets = [0, 36], sizes = [8, 1], strides = [1, 1]} : vector<8x64xf32> to vector<8x1xf32>
    %81 = vector.broadcast %80 : vector<8x1xf32> to vector<8x256xf32>
    %82 = arith.mulf %71, %81 : vector<8x256xf32>
    %83 = arith.addf %55, %82 : vector<8x256xf32>
    %84 = vector.extract_strided_slice %1 {offsets = [0, 52], sizes = [8, 1], strides = [1, 1]} : vector<8x64xf32> to vector<8x1xf32>
    %85 = vector.broadcast %84 : vector<8x1xf32> to vector<8x256xf32>
    %86 = arith.mulf %71, %85 : vector<8x256xf32>
    %87 = arith.addf %69, %86 : vector<8x256xf32>
    %c5 = arith.constant 5 : index
    %c0_17 = arith.constant 0 : index
    %c0_18 = arith.constant 0 : index
    %88 = vector.load %arg0[%c5, %c0_17, %c0_18] : memref<16x8x256xf32, #tpu.memory_space<vmem>>, vector<1x8x256xf32>
    %89 = vector.shape_cast %88 : vector<1x8x256xf32> to vector<8x256xf32>
    %90 = vector.extract_strided_slice %1 {offsets = [0, 5], sizes = [8, 1], strides = [1, 1]} : vector<8x64xf32> to vector<8x1xf32>
    %91 = vector.broadcast %90 : vector<8x1xf32> to vector<8x256xf32>
    %92 = arith.mulf %89, %91 : vector<8x256xf32>
    %93 = arith.addf %75, %92 : vector<8x256xf32>
    %94 = vector.extract_strided_slice %1 {offsets = [0, 21], sizes = [8, 1], strides = [1, 1]} : vector<8x64xf32> to vector<8x1xf32>
    %95 = vector.broadcast %94 : vector<8x1xf32> to vector<8x256xf32>
    %96 = arith.mulf %89, %95 : vector<8x256xf32>
    %97 = arith.addf %79, %96 : vector<8x256xf32>
    %98 = vector.extract_strided_slice %1 {offsets = [0, 37], sizes = [8, 1], strides = [1, 1]} : vector<8x64xf32> to vector<8x1xf32>
    %99 = vector.broadcast %98 : vector<8x1xf32> to vector<8x256xf32>
    %100 = arith.mulf %89, %99 : vector<8x256xf32>
    %101 = arith.addf %83, %100 : vector<8x256xf32>
    %102 = vector.extract_strided_slice %1 {offsets = [0, 53], sizes = [8, 1], strides = [1, 1]} : vector<8x64xf32> to vector<8x1xf32>
    %103 = vector.broadcast %102 : vector<8x1xf32> to vector<8x256xf32>
    %104 = arith.mulf %89, %103 : vector<8x256xf32>
    %105 = arith.addf %87, %104 : vector<8x256xf32>
    %c6 = arith.constant 6 : index
    %c0_19 = arith.constant 0 : index
    %c0_20 = arith.constant 0 : index
    %106 = vector.load %arg0[%c6, %c0_19, %c0_20] : memref<16x8x256xf32, #tpu.memory_space<vmem>>, vector<1x8x256xf32>
    %107 = vector.shape_cast %106 : vector<1x8x256xf32> to vector<8x256xf32>
    %108 = vector.extract_strided_slice %1 {offsets = [0, 6], sizes = [8, 1], strides = [1, 1]} : vector<8x64xf32> to vector<8x1xf32>
    %109 = vector.broadcast %108 : vector<8x1xf32> to vector<8x256xf32>
    %110 = arith.mulf %107, %109 : vector<8x256xf32>
    %111 = arith.addf %93, %110 : vector<8x256xf32>
    %112 = vector.extract_strided_slice %1 {offsets = [0, 22], sizes = [8, 1], strides = [1, 1]} : vector<8x64xf32> to vector<8x1xf32>
    %113 = vector.broadcast %112 : vector<8x1xf32> to vector<8x256xf32>
    %114 = arith.mulf %107, %113 : vector<8x256xf32>
    %115 = arith.addf %97, %114 : vector<8x256xf32>
    %116 = vector.extract_strided_slice %1 {offsets = [0, 38], sizes = [8, 1], strides = [1, 1]} : vector<8x64xf32> to vector<8x1xf32>
    %117 = vector.broadcast %116 : vector<8x1xf32> to vector<8x256xf32>
    %118 = arith.mulf %107, %117 : vector<8x256xf32>
    %119 = arith.addf %101, %118 : vector<8x256xf32>
    %120 = vector.extract_strided_slice %1 {offsets = [0, 54], sizes = [8, 1], strides = [1, 1]} : vector<8x64xf32> to vector<8x1xf32>
    %121 = vector.broadcast %120 : vector<8x1xf32> to vector<8x256xf32>
    %122 = arith.mulf %107, %121 : vector<8x256xf32>
    %123 = arith.addf %105, %122 : vector<8x256xf32>
    %c7 = arith.constant 7 : index
    %c0_21 = arith.constant 0 : index
    %c0_22 = arith.constant 0 : index
    %124 = vector.load %arg0[%c7, %c0_21, %c0_22] : memref<16x8x256xf32, #tpu.memory_space<vmem>>, vector<1x8x256xf32>
    %125 = vector.shape_cast %124 : vector<1x8x256xf32> to vector<8x256xf32>
    %126 = vector.extract_strided_slice %1 {offsets = [0, 23], sizes = [8, 1], strides = [1, 1]} : vector<8x64xf32> to vector<8x1xf32>
    %127 = vector.broadcast %126 : vector<8x1xf32> to vector<8x256xf32>
    %128 = arith.mulf %125, %127 : vector<8x256xf32>
    %129 = arith.addf %115, %128 : vector<8x256xf32>
    %130 = vector.extract_strided_slice %1 {offsets = [0, 55], sizes = [8, 1], strides = [1, 1]} : vector<8x64xf32> to vector<8x1xf32>
    %131 = vector.broadcast %130 : vector<8x1xf32> to vector<8x256xf32>
    %132 = arith.mulf %125, %131 : vector<8x256xf32>
    %133 = arith.addf %123, %132 : vector<8x256xf32>
    %c8 = arith.constant 8 : index
    %c0_23 = arith.constant 0 : index
    %c0_24 = arith.constant 0 : index
    %134 = vector.load %arg0[%c8, %c0_23, %c0_24] : memref<16x8x256xf32, #tpu.memory_space<vmem>>, vector<1x8x256xf32>
    %135 = vector.shape_cast %134 : vector<1x8x256xf32> to vector<8x256xf32>
    %136 = vector.extract_strided_slice %1 {offsets = [0, 8], sizes = [8, 1], strides = [1, 1]} : vector<8x64xf32> to vector<8x1xf32>
    %137 = vector.broadcast %136 : vector<8x1xf32> to vector<8x256xf32>
    %138 = arith.mulf %135, %137 : vector<8x256xf32>
    %139 = arith.addf %111, %138 : vector<8x256xf32>
    %140 = vector.extract_strided_slice %1 {offsets = [0, 24], sizes = [8, 1], strides = [1, 1]} : vector<8x64xf32> to vector<8x1xf32>
    %141 = vector.broadcast %140 : vector<8x1xf32> to vector<8x256xf32>
    %142 = arith.mulf %135, %141 : vector<8x256xf32>
    %143 = arith.addf %129, %142 : vector<8x256xf32>
    %144 = vector.extract_strided_slice %1 {offsets = [0, 40], sizes = [8, 1], strides = [1, 1]} : vector<8x64xf32> to vector<8x1xf32>
    %145 = vector.broadcast %144 : vector<8x1xf32> to vector<8x256xf32>
    %146 = arith.mulf %135, %145 : vector<8x256xf32>
    %147 = arith.addf %119, %146 : vector<8x256xf32>
    %148 = vector.extract_strided_slice %1 {offsets = [0, 56], sizes = [8, 1], strides = [1, 1]} : vector<8x64xf32> to vector<8x1xf32>
    %149 = vector.broadcast %148 : vector<8x1xf32> to vector<8x256xf32>
    %150 = arith.mulf %135, %149 : vector<8x256xf32>
    %151 = arith.addf %133, %150 : vector<8x256xf32>
    %c9 = arith.constant 9 : index
    %c0_25 = arith.constant 0 : index
    %c0_26 = arith.constant 0 : index
    %152 = vector.load %arg0[%c9, %c0_25, %c0_26] : memref<16x8x256xf32, #tpu.memory_space<vmem>>, vector<1x8x256xf32>
    %153 = vector.shape_cast %152 : vector<1x8x256xf32> to vector<8x256xf32>
    %154 = vector.extract_strided_slice %1 {offsets = [0, 9], sizes = [8, 1], strides = [1, 1]} : vector<8x64xf32> to vector<8x1xf32>
    %155 = vector.broadcast %154 : vector<8x1xf32> to vector<8x256xf32>
    %156 = arith.mulf %153, %155 : vector<8x256xf32>
    %157 = arith.addf %139, %156 : vector<8x256xf32>
    %158 = vector.extract_strided_slice %1 {offsets = [0, 25], sizes = [8, 1], strides = [1, 1]} : vector<8x64xf32> to vector<8x1xf32>
    %159 = vector.broadcast %158 : vector<8x1xf32> to vector<8x256xf32>
    %160 = arith.mulf %153, %159 : vector<8x256xf32>
    %161 = arith.addf %143, %160 : vector<8x256xf32>
    %162 = vector.extract_strided_slice %1 {offsets = [0, 41], sizes = [8, 1], strides = [1, 1]} : vector<8x64xf32> to vector<8x1xf32>
    %163 = vector.broadcast %162 : vector<8x1xf32> to vector<8x256xf32>
    %164 = arith.mulf %153, %163 : vector<8x256xf32>
    %165 = arith.addf %147, %164 : vector<8x256xf32>
    %166 = vector.extract_strided_slice %1 {offsets = [0, 57], sizes = [8, 1], strides = [1, 1]} : vector<8x64xf32> to vector<8x1xf32>
    %167 = vector.broadcast %166 : vector<8x1xf32> to vector<8x256xf32>
    %168 = arith.mulf %153, %167 : vector<8x256xf32>
    %169 = arith.addf %151, %168 : vector<8x256xf32>
    %c10 = arith.constant 10 : index
    %c0_27 = arith.constant 0 : index
    %c0_28 = arith.constant 0 : index
    %170 = vector.load %arg0[%c10, %c0_27, %c0_28] : memref<16x8x256xf32, #tpu.memory_space<vmem>>, vector<1x8x256xf32>
    %171 = vector.shape_cast %170 : vector<1x8x256xf32> to vector<8x256xf32>
    %172 = vector.extract_strided_slice %1 {offsets = [0, 10], sizes = [8, 1], strides = [1, 1]} : vector<8x64xf32> to vector<8x1xf32>
    %173 = vector.broadcast %172 : vector<8x1xf32> to vector<8x256xf32>
    %174 = arith.mulf %171, %173 : vector<8x256xf32>
    %175 = arith.addf %157, %174 : vector<8x256xf32>
    %176 = vector.extract_strided_slice %1 {offsets = [0, 26], sizes = [8, 1], strides = [1, 1]} : vector<8x64xf32> to vector<8x1xf32>
    %177 = vector.broadcast %176 : vector<8x1xf32> to vector<8x256xf32>
    %178 = arith.mulf %171, %177 : vector<8x256xf32>
    %179 = arith.addf %161, %178 : vector<8x256xf32>
    %180 = vector.extract_strided_slice %1 {offsets = [0, 42], sizes = [8, 1], strides = [1, 1]} : vector<8x64xf32> to vector<8x1xf32>
    %181 = vector.broadcast %180 : vector<8x1xf32> to vector<8x256xf32>
    %182 = arith.mulf %171, %181 : vector<8x256xf32>
    %183 = arith.addf %165, %182 : vector<8x256xf32>
    %184 = vector.extract_strided_slice %1 {offsets = [0, 58], sizes = [8, 1], strides = [1, 1]} : vector<8x64xf32> to vector<8x1xf32>
    %185 = vector.broadcast %184 : vector<8x1xf32> to vector<8x256xf32>
    %186 = arith.mulf %171, %185 : vector<8x256xf32>
    %187 = arith.addf %169, %186 : vector<8x256xf32>
    %c11 = arith.constant 11 : index
    %c0_29 = arith.constant 0 : index
    %c0_30 = arith.constant 0 : index
    %188 = vector.load %arg0[%c11, %c0_29, %c0_30] : memref<16x8x256xf32, #tpu.memory_space<vmem>>, vector<1x8x256xf32>
    %189 = vector.shape_cast %188 : vector<1x8x256xf32> to vector<8x256xf32>
    %190 = vector.extract_strided_slice %1 {offsets = [0, 27], sizes = [8, 1], strides = [1, 1]} : vector<8x64xf32> to vector<8x1xf32>
    %191 = vector.broadcast %190 : vector<8x1xf32> to vector<8x256xf32>
    %192 = arith.mulf %189, %191 : vector<8x256xf32>
    %193 = arith.addf %179, %192 : vector<8x256xf32>
    %194 = vector.extract_strided_slice %1 {offsets = [0, 59], sizes = [8, 1], strides = [1, 1]} : vector<8x64xf32> to vector<8x1xf32>
    %195 = vector.broadcast %194 : vector<8x1xf32> to vector<8x256xf32>
    %196 = arith.mulf %189, %195 : vector<8x256xf32>
    %197 = arith.addf %187, %196 : vector<8x256xf32>
    %c12 = arith.constant 12 : index
    %c0_31 = arith.constant 0 : index
    %c0_32 = arith.constant 0 : index
    %198 = vector.load %arg0[%c12, %c0_31, %c0_32] : memref<16x8x256xf32, #tpu.memory_space<vmem>>, vector<1x8x256xf32>
    %199 = vector.shape_cast %198 : vector<1x8x256xf32> to vector<8x256xf32>
    %200 = vector.extract_strided_slice %1 {offsets = [0, 44], sizes = [8, 1], strides = [1, 1]} : vector<8x64xf32> to vector<8x1xf32>
    %201 = vector.broadcast %200 : vector<8x1xf32> to vector<8x256xf32>
    %202 = arith.mulf %199, %201 : vector<8x256xf32>
    %203 = arith.addf %183, %202 : vector<8x256xf32>
    %204 = vector.extract_strided_slice %1 {offsets = [0, 60], sizes = [8, 1], strides = [1, 1]} : vector<8x64xf32> to vector<8x1xf32>
    %205 = vector.broadcast %204 : vector<8x1xf32> to vector<8x256xf32>
    %206 = arith.mulf %199, %205 : vector<8x256xf32>
    %207 = arith.addf %197, %206 : vector<8x256xf32>
    %c13 = arith.constant 13 : index
    %c0_33 = arith.constant 0 : index
    %c0_34 = arith.constant 0 : index
    %208 = vector.load %arg0[%c13, %c0_33, %c0_34] : memref<16x8x256xf32, #tpu.memory_space<vmem>>, vector<1x8x256xf32>
    %209 = vector.shape_cast %208 : vector<1x8x256xf32> to vector<8x256xf32>
    %210 = vector.extract_strided_slice %1 {offsets = [0, 45], sizes = [8, 1], strides = [1, 1]} : vector<8x64xf32> to vector<8x1xf32>
    %211 = vector.broadcast %210 : vector<8x1xf32> to vector<8x256xf32>
    %212 = arith.mulf %209, %211 : vector<8x256xf32>
    %213 = arith.addf %203, %212 : vector<8x256xf32>
    %214 = vector.extract_strided_slice %1 {offsets = [0, 61], sizes = [8, 1], strides = [1, 1]} : vector<8x64xf32> to vector<8x1xf32>
    %215 = vector.broadcast %214 : vector<8x1xf32> to vector<8x256xf32>
    %216 = arith.mulf %209, %215 : vector<8x256xf32>
    %217 = arith.addf %207, %216 : vector<8x256xf32>
    %c14 = arith.constant 14 : index
    %c0_35 = arith.constant 0 : index
    %c0_36 = arith.constant 0 : index
    %218 = vector.load %arg0[%c14, %c0_35, %c0_36] : memref<16x8x256xf32, #tpu.memory_space<vmem>>, vector<1x8x256xf32>
    %219 = vector.shape_cast %218 : vector<1x8x256xf32> to vector<8x256xf32>
    %220 = vector.extract_strided_slice %1 {offsets = [0, 46], sizes = [8, 1], strides = [1, 1]} : vector<8x64xf32> to vector<8x1xf32>
    %221 = vector.broadcast %220 : vector<8x1xf32> to vector<8x256xf32>
    %222 = arith.mulf %219, %221 : vector<8x256xf32>
    %223 = arith.addf %213, %222 : vector<8x256xf32>
    %224 = vector.extract_strided_slice %1 {offsets = [0, 62], sizes = [8, 1], strides = [1, 1]} : vector<8x64xf32> to vector<8x1xf32>
    %225 = vector.broadcast %224 : vector<8x1xf32> to vector<8x256xf32>
    %226 = arith.mulf %219, %225 : vector<8x256xf32>
    %227 = arith.addf %217, %226 : vector<8x256xf32>
    %c15 = arith.constant 15 : index
    %c0_37 = arith.constant 0 : index
    %c0_38 = arith.constant 0 : index
    %228 = vector.load %arg0[%c15, %c0_37, %c0_38] : memref<16x8x256xf32, #tpu.memory_space<vmem>>, vector<1x8x256xf32>
    %229 = vector.shape_cast %228 : vector<1x8x256xf32> to vector<8x256xf32>
    %230 = vector.extract_strided_slice %1 {offsets = [0, 63], sizes = [8, 1], strides = [1, 1]} : vector<8x64xf32> to vector<8x1xf32>
    %231 = vector.broadcast %230 : vector<8x1xf32> to vector<8x256xf32>
    %232 = arith.mulf %229, %231 : vector<8x256xf32>
    %233 = arith.addf %227, %232 : vector<8x256xf32>
    %234 = tpu.concatenate %175, %193, %223, %233 in 1 : vector<8x256xf32>, vector<8x256xf32>, vector<8x256xf32>, vector<8x256xf32> -> vector<8x1024xf32>
    %c0_39 = arith.constant 0 : index
    %c0_40 = arith.constant 0 : index
    %235 = vector.load %arg3[%c0_39, %c0_40] : memref<8x1xf32, #tpu.memory_space<vmem>>, vector<8x1xf32>
    %236 = vector.broadcast %235 : vector<8x1xf32> to vector<8x1024xf32>
    %237 = arith.addf %234, %236 : vector<8x1024xf32>
    %238 = vector.broadcast %0 : vector<1x1024xf32> to vector<8x1024xf32>
    %239 = arith.mulf %237, %238 : vector<8x1024xf32>
    %cst_41 = arith.constant dense<0.000000e+00> : vector<8xf32>
    %240 = vector.multi_reduction <add>, %239, %cst_41 [1] : vector<8x1024xf32> to vector<8xf32>
    %241 = vector.shape_cast %240 : vector<8xf32> to vector<8x1xf32>
    %cst_42 = arith.constant 0.00104058278 : f32
    %242 = vector.broadcast %cst_42 : f32 to vector<8x1xf32>
    %243 = arith.mulf %241, %242 : vector<8x1xf32>
    %244 = arith.mulf %239, %239 : vector<8x1024xf32>
    %cst_43 = arith.constant dense<0.000000e+00> : vector<8xf32>
    %245 = vector.multi_reduction <add>, %244, %cst_43 [1] : vector<8x1024xf32> to vector<8xf32>
    %246 = vector.shape_cast %245 : vector<8xf32> to vector<8x1xf32>
    %cst_44 = arith.constant 0.00104058278 : f32
    %247 = vector.broadcast %cst_44 : f32 to vector<8x1xf32>
    %248 = arith.mulf %246, %247 : vector<8x1xf32>
    %c0_45 = arith.constant 0 : index
    %c0_46 = arith.constant 0 : index
    %249 = vector.load %arg4[%c0_45, %c0_46] : memref<8x1xf32, #tpu.memory_space<vmem>>, vector<8x1xf32>
    %250 = arith.mulf %243, %243 : vector<8x1xf32>
    %251 = arith.subf %248, %250 : vector<8x1xf32>
    %cst_47 = arith.constant 9.99999974E-6 : f32
    %252 = vector.broadcast %cst_47 : f32 to vector<8x1xf32>
    %253 = arith.addf %251, %252 : vector<8x1xf32>
    %254 = math.rsqrt %253 : vector<8x1xf32>
    %255 = arith.mulf %249, %254 : vector<8x1xf32>
    %c0_48 = arith.constant 0 : index
    %c0_49 = arith.constant 0 : index
    %256 = vector.load %arg5[%c0_48, %c0_49] : memref<8x1xf32, #tpu.memory_space<vmem>>, vector<8x1xf32>
    %257 = arith.mulf %243, %255 : vector<8x1xf32>
    %258 = arith.subf %256, %257 : vector<8x1xf32>
    %259 = vector.broadcast %255 : vector<8x1xf32> to vector<8x1024xf32>
    %260 = arith.mulf %239, %259 : vector<8x1024xf32>
    %261 = vector.broadcast %258 : vector<8x1xf32> to vector<8x1024xf32>
    %262 = arith.addf %260, %261 : vector<8x1024xf32>
    %c0_50 = arith.constant 0 : index
    %c0_51 = arith.constant 0 : index
    %263 = vector.load %arg6[%c0_50, %c0_51] : memref<32x8xf32, #tpu.memory_space<vmem>>, vector<32x8xf32>
    %cst_52 = arith.constant dense<0.000000e+00> : vector<32x1024xf32>
    %264 = tpu.matmul %263, %262, %cst_52 {dimension_numbers = #tpu.dot_dimension_numbers<[1], [0], [0], [1], [0, 0, 1, 1], [], []>} : vector<32x8xf32>, vector<8x1024xf32>, vector<32x1024xf32> -> vector<32x1024xf32>
    %c0_53 = arith.constant 0 : index
    %c0_54 = arith.constant 0 : index
    %265 = vector.load %arg7[%c0_53, %c0_54] : memref<32x1xf32, #tpu.memory_space<vmem>>, vector<32x1xf32>
    %266 = vector.broadcast %265 : vector<32x1xf32> to vector<32x1024xf32>
    %267 = arith.addf %264, %266 : vector<32x1024xf32>
    %cst_55 = arith.constant 5.000000e-01 : f32
    %268 = vector.broadcast %cst_55 : f32 to vector<32x1024xf32>
    %269 = arith.mulf %268, %267 : vector<32x1024xf32>
    %cst_56 = arith.constant 0.707106769 : f32
    %270 = vector.broadcast %cst_56 : f32 to vector<32x1024xf32>
    %271 = arith.mulf %267, %270 : vector<32x1024xf32>
    %272 = math.erf %271 : vector<32x1024xf32>
    %cst_57 = arith.constant 1.000000e+00 : f32
    %273 = vector.broadcast %cst_57 : f32 to vector<32x1024xf32>
    %274 = arith.addf %273, %272 : vector<32x1024xf32>
    %275 = arith.mulf %269, %274 : vector<32x1024xf32>
    %c5_58 = arith.constant 5 : index
    %c0_59 = arith.constant 0 : index
    %c0_60 = arith.constant 0 : index
    %276 = vector.load %arg0[%c5_58, %c0_59, %c0_60] : memref<16x8x256xf32, #tpu.memory_space<vmem>>, vector<1x8x256xf32>
    %277 = vector.shape_cast %276 : vector<1x8x256xf32> to vector<8x256xf32>
    %cst_61 = arith.constant 0.000000e+00 : f32
    %278 = vector.broadcast %cst_61 : f32 to vector<8x768xf32>
    %279 = tpu.concatenate %277, %278 in 1 : vector<8x256xf32>, vector<8x768xf32> -> vector<8x1024xf32>
    %280 = tpu.concatenate %275, %279 in 0 : vector<32x1024xf32>, vector<8x1024xf32> -> vector<40x1024xf32>
    %c0_62 = arith.constant 0 : index
    %c0_63 = arith.constant 0 : index
    %281 = vector.load %arg8[%c0_62, %c0_63] : memref<16x40xf32, #tpu.memory_space<vmem>>, vector<16x40xf32>
    %cst_64 = arith.constant dense<0.000000e+00> : vector<16x1024xf32>
    %282 = tpu.matmul %281, %280, %cst_64 {dimension_numbers = #tpu.dot_dimension_numbers<[1], [0], [0], [1], [0, 0, 1, 1], [], []>} : vector<16x40xf32>, vector<40x1024xf32>, vector<16x1024xf32> -> vector<16x1024xf32>
    %c0_65 = arith.constant 0 : index
    %c0_66 = arith.constant 0 : index
    %283 = vector.load %arg9[%c0_65, %c0_66] : memref<16x1xf32, #tpu.memory_space<vmem>>, vector<16x1xf32>
    %284 = vector.broadcast %283 : vector<16x1xf32> to vector<16x1024xf32>
    %285 = arith.addf %282, %284 : vector<16x1024xf32>
    %c0_67 = arith.constant 0 : index
    %c0_68 = arith.constant 0 : index
    %286 = vector.load %arg10[%c0_67, %c0_68] : memref<16x1024xf32, #tpu.memory_space<vmem>>, vector<16x1024xf32>
    tpu.vector_store %arg10[%c0_67, %c0_68], %285 {strides = array<i32>} : memref<16x1024xf32, #tpu.memory_space<vmem>>, vector<16x1024xf32>,
    return
  }
}

</mosaic_0001>

<llo_original>
// kernel: tpu_custom_call.1
$region0: #{tpu_custom_call.1}
  #allocation0 [shape = 'u32[]', space=smem, size = 0x4, offset = 0x4, fixed_abs, tag = 'smem constant byte address 0x4 - core index']
  #allocation1 [shape = 'u32[144,128]{1,0:T(1,128)}', space=vmem, size = 0x12000, scoped, tag = 'internal scratch']
  %s0 = inlined_call_operand.hbm [shape: f32[16,8,256], index: 0, kind: input, shape index: {}]
  %s1 = inlined_call_operand.vmem [shape: f32[1,1024], index: 1, kind: input, shape index: {}]
  %s2 = inlined_call_operand.vmem [shape: f32[8,64], index: 2, kind: input, shape index: {}]
  %s3 = inlined_call_operand.vmem [shape: f32[8,1], index: 3, kind: input, shape index: {}]
  %s4 = inlined_call_operand.vmem [shape: f32[8,1], index: 4, kind: input, shape index: {}]
  %s5 = inlined_call_operand.vmem [shape: f32[8,1], index: 5, kind: input, shape index: {}]
  %s6 = inlined_call_operand.vmem [shape: f32[32,8], index: 6, kind: input, shape index: {}]
  %s7 = inlined_call_operand.vmem [shape: f32[32,1], index: 7, kind: input, shape index: {}]
  %s8 = inlined_call_operand.vmem [shape: f32[16,40], index: 8, kind: input, shape index: {}]
  %s9 = inlined_call_operand.vmem [shape: f32[16,1], index: 9, kind: input, shape index: {}]
  %s10 = inlined_call_operand.hbm [shape: f32[16,1024], index: 10, kind: output, shape index: {}]
  %s11 = sld [smem:[#allocation0]]
  $region54: #{tpu_custom_call.1} parent=0
    _
  %s13 = ssub.s32 1, %s11
  %s14 = scalar_select 0, %s13, %s11
  $region1: #{tpu_custom_call.1} parent=0
    #allocation2 [shape = 'u8[131072]{0}', space=vmem, size = 0x20000, scoped, tag = 'input window, operand 0, single buffered']
    #allocation3 [shape = 's32[1]{0}', space=sflag, size = 0x4, scoped, tag = 'scoped memory for tpu_custom_call.1']
    #allocation4 [shape = 's32[1]{0}', space=sflag, size = 0x4, scoped, tag = 'scoped memory for tpu_custom_call.1']
    #allocation5 [shape = 'u8[65536]{0}', space=vmem, size = 0x10000, scoped, tag = 'output window, operand 0, single buffered']
    %15 = vsyncpa [#allocation3], 0
    %16 = vsyncpa [#allocation4], 0
    // Predicated region
    $region2: #{tpu_custom_call.1} parent=1 // pred_check
      _
    $region3: #{tpu_custom_call.1} parent=1 // pred_check_branch
      %18 = sbr.rel (0) target = $region5
    $region4: #{tpu_custom_call.1} parent=1 // pred_region
      %s20 = ssub.s32 4096, 4096
      %21 = vsyncadd [#allocation3], %s20
      %s22 = sshll.u32 [#allocation2], 4
      %s23 = int_to_ptr.vmem [resolvable:$true] %s22
      %28 = dma.hbm_to_vmem [thread:$0]  %s0, 4096, %s23, [#allocation3], 256, 256, 16
    $region5: #{tpu_custom_call.1} parent=1 // pred_fallthru
      _
    // Predicated region
    $region6: #{tpu_custom_call.1} parent=1 // pred_check
      _
    $region7: #{tpu_custom_call.1} parent=1 // pred_check_branch
      %30 = sbr.rel (0) target = $region9
    $region8: #{tpu_custom_call.1} parent=1 // pred_region
      _
    $region9: #{tpu_custom_call.1} parent=1 // pred_fallthru
      _
    // Predicated region
    $region10: #{tpu_custom_call.1} parent=1 // pred_check
      _
    $region11: #{tpu_custom_call.1} parent=1 // pred_check_branch
      %32 = sbr.rel (0) target = $region13
    $region12: #{tpu_custom_call.1} parent=1 // pred_region
      _
    $region13: #{tpu_custom_call.1} parent=1 // pred_fallthru
      _
    // Predicated region
    $region14: #{tpu_custom_call.1} parent=1 // pred_check
      _
    $region15: #{tpu_custom_call.1} parent=1 // pred_check_branch
      %34 = sbr.rel (0) target = $region17
    $region16: #{tpu_custom_call.1} parent=1 // pred_region
      _
    $region17: #{tpu_custom_call.1} parent=1 // pred_fallthru
      _
    // Predicated region
    $region18: #{tpu_custom_call.1} parent=1 // pred_check
      _
    $region19: #{tpu_custom_call.1} parent=1 // pred_check_branch
      %36 = sbr.rel (0) target = $region21
    $region20: #{tpu_custom_call.1} parent=1 // pred_region
      _
    $region21: #{tpu_custom_call.1} parent=1 // pred_fallthru
      _
    // Predicated region
    $region22: #{tpu_custom_call.1} parent=1 // pred_check
      _
    $region23: #{tpu_custom_call.1} parent=1 // pred_check_branch
      %38 = sbr.rel (0) target = $region25
    $region24: #{tpu_custom_call.1} parent=1 // pred_region
      _
    $region25: #{tpu_custom_call.1} parent=1 // pred_fallthru
      _
    // Predicated region
    $region26: #{tpu_custom_call.1} parent=1 // pred_check
      _
    $region27: #{tpu_custom_call.1} parent=1 // pred_check_branch
      %40 = sbr.rel (0) target = $region29
    $region28: #{tpu_custom_call.1} parent=1 // pred_region
      _
    $region29: #{tpu_custom_call.1} parent=1 // pred_fallthru
      _
    // Predicated region
    $region30: #{tpu_custom_call.1} parent=1 // pred_check
      _
    $region31: #{tpu_custom_call.1} parent=1 // pred_check_branch
      %42 = sbr.rel (0) target = $region33
    $region32: #{tpu_custom_call.1} parent=1 // pred_region
      _
    $region33: #{tpu_custom_call.1} parent=1 // pred_fallthru
      _
    // Predicated region
    $region34: #{tpu_custom_call.1} parent=1 // pred_check
      _
    $region35: #{tpu_custom_call.1} parent=1 // pred_check_branch
      %44 = sbr.rel (0) target = $region37
    $region36: #{tpu_custom_call.1} parent=1 // pred_region
      _
    $region37: #{tpu_custom_call.1} parent=1 // pred_fallthru
      _
    // Predicated region
    $region38: #{tpu_custom_call.1} parent=1 // pred_check
      _
    $region39: #{tpu_custom_call.1} parent=1 // pred_check_branch
      %46 = sbr.rel (0) target = $region41
    $region40: #{tpu_custom_call.1} parent=1 // pred_region
      _
    $region41: #{tpu_custom_call.1} parent=1 // pred_fallthru
      _
    // Predicated region
    $region42: #{tpu_custom_call.1} parent=1 // pred_check
      _
    $region43: #{tpu_custom_call.1} parent=1 // pred_check_branch
      %48 = sbr.rel (0) target = $region45
    $region44: #{tpu_custom_call.1} parent=1 // pred_region
      %49 = dma.done [#allocation3], 4096
    $region45: #{tpu_custom_call.1} parent=1 // pred_fallthru
      _
    %v50 = vld [vmem:[%s1] sm:$0xff]
    %v51 = vld [vmem:[%s2] sm:$0xff]
    %v52 = vld [vmem:[#allocation2] sm:$0xff]
    %v53 = vld [vmem:[#allocation2 + $0x8] sm:$0xff]
    %55 = vset.pattern.permute.xlu0 0
    %56 = vperm.xlu0 %55, %v51
    %v57 = vpop.permute.xlu0 %56
    %v59 = vmul.f32 %v52, %v57
    %v60 = vmul.f32 %v53, %v57
    %v61 = vadd.f32 %v59, 0.0
    %v62 = vadd.f32 %v60, 0.0
    %63 = vset.pattern.permute.xlu0 16
    %64 = vperm.xlu0 %63, %v51
    %v65 = vpop.permute.xlu0 %64
    %v67 = vmul.f32 %v52, %v65
    %v68 = vmul.f32 %v53, %v65
    %v69 = vadd.f32 %v67, 0.0
    %v70 = vadd.f32 %v68, 0.0
    %71 = vset.pattern.permute.xlu0 32
    %72 = vperm.xlu0 %71, %v51
    %v73 = vpop.permute.xlu0 %72
    %v75 = vmul.f32 %v52, %v73
    %v76 = vmul.f32 %v53, %v73
    %v77 = vadd.f32 %v75, 0.0
    %v78 = vadd.f32 %v76, 0.0
    %79 = vset.pattern.permute.xlu0 48
    %80 = vperm.xlu0 %79, %v51
    %v81 = vpop.permute.xlu0 %80
    %v83 = vmul.f32 %v52, %v81
    %v84 = vmul.f32 %v53, %v81
    %v85 = vadd.f32 %v83, 0.0
    %v86 = vadd.f32 %v84, 0.0
    %s87 = scalar_lea.vmem [#allocation2], 16
    %v88 = vld [vmem:[%s87] sm:$0xff]
    %v89 = vld [vmem:[%s87 + $0x8] sm:$0xff]
    %90 = vset.pattern.permute.xlu0 1
    %91 = vperm.xlu0 %90, %v51
    %v92 = vpop.permute.xlu0 %91
    %v94 = vmul.f32 %v88, %v92
    %v95 = vmul.f32 %v89, %v92
    %v96 = vadd.f32 %v61, %v94
    %v97 = vadd.f32 %v62, %v95
    %98 = vset.pattern.permute.xlu0 17
    %99 = vperm.xlu0 %98, %v51
    %v100 = vpop.permute.xlu0 %99
    %v102 = vmul.f32 %v88, %v100
    %v103 = vmul.f32 %v89, %v100
    %v104 = vadd.f32 %v69, %v102
    %v105 = vadd.f32 %v70, %v103
    %106 = vset.pattern.permute.xlu0 33
    %107 = vperm.xlu0 %106, %v51
    %v108 = vpop.permute.xlu0 %107
    %v110 = vmul.f32 %v88, %v108
    %v111 = vmul.f32 %v89, %v108
    %v112 = vadd.f32 %v77, %v110
    %v113 = vadd.f32 %v78, %v111
    %114 = vset.pattern.permute.xlu0 49
    %115 = vperm.xlu0 %114, %v51
    %v116 = vpop.permute.xlu0 %115
    %v118 = vmul.f32 %v88, %v116
    %v119 = vmul.f32 %v89, %v116
    %v120 = vadd.f32 %v85, %v118
    %v121 = vadd.f32 %v86, %v119
    %s122 = scalar_lea.vmem [#allocation2], 32
    %v123 = vld [vmem:[%s122] sm:$0xff]
    %v124 = vld [vmem:[%s122 + $0x8] sm:$0xff]
    %125 = vset.pattern.permute.xlu0 2
    %126 = vperm.xlu0 %125, %v51
    %v127 = vpop.permute.xlu0 %126
    %v129 = vmul.f32 %v123, %v127
    %v130 = vmul.f32 %v124, %v127
    %v131 = vadd.f32 %v96, %v129
    %v132 = vadd.f32 %v97, %v130
    %133 = vset.pattern.permute.xlu0 18
    %134 = vperm.xlu0 %133, %v51
    %v135 = vpop.permute.xlu0 %134
    %v137 = vmul.f32 %v123, %v135
    %v138 = vmul.f32 %v124, %v135
    %v139 = vadd.f32 %v104, %v137
    %v140 = vadd.f32 %v105, %v138
    %141 = vset.pattern.permute.xlu0 34
    %142 = vperm.xlu0 %141, %v51
    %v143 = vpop.permute.xlu0 %142
    %v145 = vmul.f32 %v123, %v143
    %v146 = vmul.f32 %v124, %v143
    %v147 = vadd.f32 %v112, %v145
    %v148 = vadd.f32 %v113, %v146
    %149 = vset.pattern.permute.xlu0 50
    %150 = vperm.xlu0 %149, %v51
    %v151 = vpop.permute.xlu0 %150
    %v153 = vmul.f32 %v123, %v151
    %v154 = vmul.f32 %v124, %v151
    %v155 = vadd.f32 %v120, %v153
    %v156 = vadd.f32 %v121, %v154
    %s157 = scalar_lea.vmem [#allocation2], 48
    %v158 = vld [vmem:[%s157] sm:$0xff]
    %v159 = vld [vmem:[%s157 + $0x8] sm:$0xff]
    %160 = vset.pattern.permute.xlu0 19
    %161 = vperm.xlu0 %160, %v51
    %v162 = vpop.permute.xlu0 %161
    %v164 = vmul.f32 %v158, %v162
    %v165 = vmul.f32 %v159, %v162
    %v166 = vadd.f32 %v139, %v164
    %v167 = vadd.f32 %v140, %v165
    %168 = vset.pattern.permute.xlu0 51
    %169 = vperm.xlu0 %168, %v51
    %v170 = vpop.permute.xlu0 %169
    %v172 = vmul.f32 %v158, %v170
    %v173 = vmul.f32 %v159, %v170
    %v174 = vadd.f32 %v155, %v172
    %v175 = vadd.f32 %v156, %v173
    %s176 = scalar_lea.vmem [#allocation2], 64
    %v177 = vld [vmem:[%s176] sm:$0xff]
    %v178 = vld [vmem:[%s176 + $0x8] sm:$0xff]
    %179 = vset.pattern.permute.xlu0 4
    %180 = vperm.xlu0 %179, %v51
    %v181 = vpop.permute.xlu0 %180
    %v183 = vmul.f32 %v177, %v181
    %v184 = vmul.f32 %v178, %v181
    %v185 = vadd.f32 %v131, %v183
    %v186 = vadd.f32 %v132, %v184
    %187 = vset.pattern.permute.xlu0 20
    %188 = vperm.xlu0 %187, %v51
    %v189 = vpop.permute.xlu0 %188
    %v191 = vmul.f32 %v177, %v189
    %v192 = vmul.f32 %v178, %v189
    %v193 = vadd.f32 %v166, %v191
    %v194 = vadd.f32 %v167, %v192
    %195 = vset.pattern.permute.xlu0 36
    %196 = vperm.xlu0 %195, %v51
    %v197 = vpop.permute.xlu0 %196
    %v199 = vmul.f32 %v177, %v197
    %v200 = vmul.f32 %v178, %v197
    %v201 = vadd.f32 %v147, %v199
    %v202 = vadd.f32 %v148, %v200
    %203 = vset.pattern.permute.xlu0 52
    %204 = vperm.xlu0 %203, %v51
    %v205 = vpop.permute.xlu0 %204
    %v207 = vmul.f32 %v177, %v205
    %v208 = vmul.f32 %v178, %v205
    %v209 = vadd.f32 %v174, %v207
    %v210 = vadd.f32 %v175, %v208
    %s211 = scalar_lea.vmem [#allocation2], 80
    %v212 = vld [vmem:[%s211] sm:$0xff]
    %v213 = vld [vmem:[%s211 + $0x8] sm:$0xff]
    %214 = vset.pattern.permute.xlu0 5
    %215 = vperm.xlu0 %214, %v51
    %v216 = vpop.permute.xlu0 %215
    %v218 = vmul.f32 %v212, %v216
    %v219 = vmul.f32 %v213, %v216
    %v220 = vadd.f32 %v185, %v218
    %v221 = vadd.f32 %v186, %v219
    %222 = vset.pattern.permute.xlu0 21
    %223 = vperm.xlu0 %222, %v51
    %v224 = vpop.permute.xlu0 %223
    %v226 = vmul.f32 %v212, %v224
    %v227 = vmul.f32 %v213, %v224
    %v228 = vadd.f32 %v193, %v226
    %v229 = vadd.f32 %v194, %v227
    %230 = vset.pattern.permute.xlu0 37
    %231 = vperm.xlu0 %230, %v51
    %v232 = vpop.permute.xlu0 %231
    %v234 = vmul.f32 %v212, %v232
    %v235 = vmul.f32 %v213, %v232
    %v236 = vadd.f32 %v201, %v234
    %v237 = vadd.f32 %v202, %v235
    %238 = vset.pattern.permute.xlu0 53
    %239 = vperm.xlu0 %238, %v51
    %v240 = vpop.permute.xlu0 %239
    %v242 = vmul.f32 %v212, %v240
    %v243 = vmul.f32 %v213, %v240
    %v244 = vadd.f32 %v209, %v242
    %v245 = vadd.f32 %v210, %v243
    %s246 = scalar_lea.vmem [#allocation2], 96
    %v247 = vld [vmem:[%s246] sm:$0xff]
    %v248 = vld [vmem:[%s246 + $0x8] sm:$0xff]
    %249 = vset.pattern.permute.xlu0 6
    %250 = vperm.xlu0 %249, %v51
    %v251 = vpop.permute.xlu0 %250
    %v253 = vmul.f32 %v247, %v251
    %v254 = vmul.f32 %v248, %v251
    %v255 = vadd.f32 %v220, %v253
    %v256 = vadd.f32 %v221, %v254
    %257 = vset.pattern.permute.xlu0 22
    %258 = vperm.xlu0 %257, %v51
    %v259 = vpop.permute.xlu0 %258
    %v261 = vmul.f32 %v247, %v259
    %v262 = vmul.f32 %v248, %v259
    %v263 = vadd.f32 %v228, %v261
    %v264 = vadd.f32 %v229, %v262
    %265 = vset.pattern.permute.xlu0 38
    %266 = vperm.xlu0 %265, %v51
    %v267 = vpop.permute.xlu0 %266
    %v269 = vmul.f32 %v247, %v267
    %v270 = vmul.f32 %v248, %v267
    %v271 = vadd.f32 %v236, %v269
    %v272 = vadd.f32 %v237, %v270
    %273 = vset.pattern.permute.xlu0 54
    %274 = vperm.xlu0 %273, %v51
    %v275 = vpop.permute.xlu0 %274
    %v277 = vmul.f32 %v247, %v275
    %v278 = vmul.f32 %v248, %v275
    %v279 = vadd.f32 %v244, %v277
    %v280 = vadd.f32 %v245, %v278
    %s281 = scalar_lea.vmem [#allocation2], 112
    %v282 = vld [vmem:[%s281] sm:$0xff]
    %v283 = vld [vmem:[%s281 + $0x8] sm:$0xff]
    %284 = vset.pattern.permute.xlu0 23
    %285 = vperm.xlu0 %284, %v51
    %v286 = vpop.permute.xlu0 %285
    %v288 = vmul.f32 %v282, %v286
    %v289 = vmul.f32 %v283, %v286
    %v290 = vadd.f32 %v263, %v288
    %v291 = vadd.f32 %v264, %v289
    %292 = vset.pattern.permute.xlu0 55
    %293 = vperm.xlu0 %292, %v51
    %v294 = vpop.permute.xlu0 %293
    %v296 = vmul.f32 %v282, %v294
    %v297 = vmul.f32 %v283, %v294
    %v298 = vadd.f32 %v279, %v296
    %v299 = vadd.f32 %v280, %v297
    %s300 = scalar_lea.vmem [#allocation2], 128
    %v301 = vld [vmem:[%s300] sm:$0xff]
    %v302 = vld [vmem:[%s300 + $0x8] sm:$0xff]
    %303 = vset.pattern.permute.xlu0 8
    %304 = vperm.xlu0 %303, %v51
    %v305 = vpop.permute.xlu0 %304
    %v307 = vmul.f32 %v301, %v305
    %v308 = vmul.f32 %v302, %v305
    %v309 = vadd.f32 %v255, %v307
    %v310 = vadd.f32 %v256, %v308
    %311 = vset.pattern.permute.xlu0 24
    %312 = vperm.xlu0 %311, %v51
    %v313 = vpop.permute.xlu0 %312
    %v315 = vmul.f32 %v301, %v313
    %v316 = vmul.f32 %v302, %v313
    %v317 = vadd.f32 %v290, %v315
    %v318 = vadd.f32 %v291, %v316
    %319 = vset.pattern.permute.xlu0 40
    %320 = vperm.xlu0 %319, %v51
    %v321 = vpop.permute.xlu0 %320
    %v323 = vmul.f32 %v301, %v321
    %v324 = vmul.f32 %v302, %v321
    %v325 = vadd.f32 %v271, %v323
    %v326 = vadd.f32 %v272, %v324
    %327 = vset.pattern.permute.xlu0 56
    %328 = vperm.xlu0 %327, %v51
    %v329 = vpop.permute.xlu0 %328
    %v331 = vmul.f32 %v301, %v329
    %v332 = vmul.f32 %v302, %v329
    %v333 = vadd.f32 %v298, %v331
    %v334 = vadd.f32 %v299, %v332
    %s335 = scalar_lea.vmem [#allocation2], 144
    %v336 = vld [vmem:[%s335] sm:$0xff]
    %v337 = vld [vmem:[%s335 + $0x8] sm:$0xff]
    %338 = vset.pattern.permute.xlu0 9
    %339 = vperm.xlu0 %338, %v51
    %v340 = vpop.permute.xlu0 %339
    %v342 = vmul.f32 %v336, %v340
    %v343 = vmul.f32 %v337, %v340
    %v344 = vadd.f32 %v309, %v342
    %v345 = vadd.f32 %v310, %v343
    %346 = vset.pattern.permute.xlu0 25
    %347 = vperm.xlu0 %346, %v51
    %v348 = vpop.permute.xlu0 %347
    %v350 = vmul.f32 %v336, %v348
    %v351 = vmul.f32 %v337, %v348
    %v352 = vadd.f32 %v317, %v350
    %v353 = vadd.f32 %v318, %v351
    %354 = vset.pattern.permute.xlu0 41
    %355 = vperm.xlu0 %354, %v51
    %v356 = vpop.permute.xlu0 %355
    %v358 = vmul.f32 %v336, %v356
    %v359 = vmul.f32 %v337, %v356
    %v360 = vadd.f32 %v325, %v358
    %v361 = vadd.f32 %v326, %v359
    %362 = vset.pattern.permute.xlu0 57
    %363 = vperm.xlu0 %362, %v51
    %v364 = vpop.permute.xlu0 %363
    %v366 = vmul.f32 %v336, %v364
    %v367 = vmul.f32 %v337, %v364
    %v368 = vadd.f32 %v333, %v366
    %v369 = vadd.f32 %v334, %v367
    %s370 = scalar_lea.vmem [#allocation2], 160
    %v371 = vld [vmem:[%s370] sm:$0xff]
    %v372 = vld [vmem:[%s370 + $0x8] sm:$0xff]
    %373 = vset.pattern.permute.xlu0 10
    %374 = vperm.xlu0 %373, %v51
    %v375 = vpop.permute.xlu0 %374
    %v377 = vmul.f32 %v371, %v375
    %v378 = vmul.f32 %v372, %v375
    %v379 = vadd.f32 %v344, %v377
    %v380 = vadd.f32 %v345, %v378
    %381 = vset.pattern.permute.xlu0 26
    %382 = vperm.xlu0 %381, %v51
    %v383 = vpop.permute.xlu0 %382
    %v385 = vmul.f32 %v371, %v383
    %v386 = vmul.f32 %v372, %v383
    %v387 = vadd.f32 %v352, %v385
    %v388 = vadd.f32 %v353, %v386
    %389 = vset.pattern.permute.xlu0 42
    %390 = vperm.xlu0 %389, %v51
    %v391 = vpop.permute.xlu0 %390
    %v393 = vmul.f32 %v371, %v391
    %v394 = vmul.f32 %v372, %v391
    %v395 = vadd.f32 %v360, %v393
    %v396 = vadd.f32 %v361, %v394
    %397 = vset.pattern.permute.xlu0 58
    %398 = vperm.xlu0 %397, %v51
    %v399 = vpop.permute.xlu0 %398
    %v401 = vmul.f32 %v371, %v399
    %v402 = vmul.f32 %v372, %v399
    %v403 = vadd.f32 %v368, %v401
    %v404 = vadd.f32 %v369, %v402
    %s405 = scalar_lea.vmem [#allocation2], 176
    %v406 = vld [vmem:[%s405] sm:$0xff]
    %v407 = vld [vmem:[%s405 + $0x8] sm:$0xff]
    %408 = vset.pattern.permute.xlu0 27
    %409 = vperm.xlu0 %408, %v51
    %v410 = vpop.permute.xlu0 %409
    %v412 = vmul.f32 %v406, %v410
    %v413 = vmul.f32 %v407, %v410
    %v414 = vadd.f32 %v387, %v412
    %v415 = vadd.f32 %v388, %v413
    %416 = vset.pattern.permute.xlu0 59
    %417 = vperm.xlu0 %416, %v51
    %v418 = vpop.permute.xlu0 %417
    %v420 = vmul.f32 %v406, %v418
    %v421 = vmul.f32 %v407, %v418
    %v422 = vadd.f32 %v403, %v420
    %v423 = vadd.f32 %v404, %v421
    %s424 = scalar_lea.vmem [#allocation2], 192
    %v425 = vld [vmem:[%s424] sm:$0xff]
    %v426 = vld [vmem:[%s424 + $0x8] sm:$0xff]
    %427 = vset.pattern.permute.xlu0 44
    %428 = vperm.xlu0 %427, %v51
    %v429 = vpop.permute.xlu0 %428
    %v431 = vmul.f32 %v425, %v429
    %v432 = vmul.f32 %v426, %v429
    %v433 = vadd.f32 %v395, %v431
    %v434 = vadd.f32 %v396, %v432
    %435 = vset.pattern.permute.xlu0 60
    %436 = vperm.xlu0 %435, %v51
    %v437 = vpop.permute.xlu0 %436
    %v439 = vmul.f32 %v425, %v437
    %v440 = vmul.f32 %v426, %v437
    %v441 = vadd.f32 %v422, %v439
    %v442 = vadd.f32 %v423, %v440
    %s443 = scalar_lea.vmem [#allocation2], 208
    %v444 = vld [vmem:[%s443] sm:$0xff]
    %v445 = vld [vmem:[%s443 + $0x8] sm:$0xff]
    %446 = vset.pattern.permute.xlu0 45
    %447 = vperm.xlu0 %446, %v51
    %v448 = vpop.permute.xlu0 %447
    %v450 = vmul.f32 %v444, %v448
    %v451 = vmul.f32 %v445, %v448
    %v452 = vadd.f32 %v433, %v450
    %v453 = vadd.f32 %v434, %v451
    %454 = vset.pattern.permute.xlu0 61
    %455 = vperm.xlu0 %454, %v51
    %v456 = vpop.permute.xlu0 %455
    %v458 = vmul.f32 %v444, %v456
    %v459 = vmul.f32 %v445, %v456
    %v460 = vadd.f32 %v441, %v458
    %v461 = vadd.f32 %v442, %v459
    %s462 = scalar_lea.vmem [#allocation2], 224
    %v463 = vld [vmem:[%s462] sm:$0xff]
    %v464 = vld [vmem:[%s462 + $0x8] sm:$0xff]
    %465 = vset.pattern.permute.xlu0 46
    %466 = vperm.xlu0 %465, %v51
    %v467 = vpop.permute.xlu0 %466
    %v469 = vmul.f32 %v463, %v467
    %v470 = vmul.f32 %v464, %v467
    %v471 = vadd.f32 %v452, %v469
    %v472 = vadd.f32 %v453, %v470
    %473 = vset.pattern.permute.xlu0 62
    %474 = vperm.xlu0 %473, %v51
    %v475 = vpop.permute.xlu0 %474
    %v477 = vmul.f32 %v463, %v475
    %v478 = vmul.f32 %v464, %v475
    %v479 = vadd.f32 %v460, %v477
    %v480 = vadd.f32 %v461, %v478
    %s481 = scalar_lea.vmem [#allocation2], 240
    %v482 = vld [vmem:[%s481] sm:$0xff]
    %v483 = vld [vmem:[%s481 + $0x8] sm:$0xff]
    %484 = vset.pattern.permute.xlu0 63
    %485 = vperm.xlu0 %484, %v51
    %v486 = vpop.permute.xlu0 %485
    %v488 = vmul.f32 %v482, %v486
    %v489 = vmul.f32 %v483, %v486
    %v490 = vadd.f32 %v479, %v488
    %v491 = vadd.f32 %v480, %v489
    %v492 = vld [vmem:[%s3] sm:$0xff]
    %494 = vset.pattern.permute.xlu0 0
    %495 = vperm.xlu0 %494, %v492
    %v496 = vpop.permute.xlu0 %495
    %v498 = vadd.f32 %v379, %v496
    %v499 = vadd.f32 %v380, %v496
    %v500 = vadd.f32 %v414, %v496
    %v501 = vadd.f32 %v415, %v496
    %v502 = vadd.f32 %v471, %v496
    %v503 = vadd.f32 %v472, %v496
    %v504 = vadd.f32 %v490, %v496
    %v505 = vadd.f32 %v491, %v496
    %v507 = vlaneseq
    %v508 = vshrl.u32 %v507, 7
    %v509 = vsub.s32 0, %v508
    %v510 = vrot.slane %v50, %v509
    %v511 = vlaneseq
    %v512 = vshrl.u32 %v511, 7
    %v513 = vsub.s32 1, %v512
    %v514 = vrot.slane %v50, %v513
    %v515 = vlaneseq
    %v516 = vshrl.u32 %v515, 7
    %v517 = vsub.s32 2, %v516
    %v518 = vrot.slane %v50, %v517
    %v519 = vlaneseq
    %v520 = vshrl.u32 %v519, 7
    %v521 = vsub.s32 3, %v520
    %v522 = vrot.slane %v50, %v521
    %v523 = vlaneseq
    %v524 = vshrl.u32 %v523, 7
    %v525 = vsub.s32 4, %v524
    %v526 = vrot.slane %v50, %v525
    %v527 = vlaneseq
    %v528 = vshrl.u32 %v527, 7
    %v529 = vsub.s32 5, %v528
    %v530 = vrot.slane %v50, %v529
    %v531 = vlaneseq
    %v532 = vshrl.u32 %v531, 7
    %v533 = vsub.s32 6, %v532
    %v534 = vrot.slane %v50, %v533
    %v535 = vlaneseq
    %v536 = vshrl.u32 %v535, 7
    %v537 = vsub.s32 7, %v536
    %v538 = vrot.slane %v50, %v537
    %v547 = vmul.f32 %v498, %v510
    %v548 = vmul.f32 %v499, %v514
    %v549 = vmul.f32 %v500, %v518
    %v550 = vmul.f32 %v501, %v522
    %v551 = vmul.f32 %v502, %v526
    %v552 = vmul.f32 %v503, %v530
    %v553 = vmul.f32 %v504, %v534
    %v554 = vmul.f32 %v505, %v538
    %v555 = vadd.f32 %v547, %v548
    %v556 = vadd.f32 %v555, %v549
    %v557 = vadd.f32 %v556, %v550
    %v558 = vadd.f32 %v557, %v551
    %v559 = vadd.f32 %v558, %v552
    %v560 = vadd.f32 %v559, %v553
    %v561 = vadd.f32 %v560, %v554
    %562 = vadd.xlane.f32.xlu0 %v561
    %v563 = vpop.xlane.xlu0 %562
    %v564 = vmul.f32 %v563, 0.0010405828
    %v565 = vmul.f32 %v547, %v547
    %v566 = vmul.f32 %v548, %v548
    %v567 = vmul.f32 %v549, %v549
    %v568 = vmul.f32 %v550, %v550
    %v569 = vmul.f32 %v551, %v551
    %v570 = vmul.f32 %v552, %v552
    %v571 = vmul.f32 %v553, %v553
    %v572 = vmul.f32 %v554, %v554
    %v573 = vadd.f32 %v565, %v566
    %v574 = vadd.f32 %v573, %v567
    %v575 = vadd.f32 %v574, %v568
    %v576 = vadd.f32 %v575, %v569
    %v577 = vadd.f32 %v576, %v570
    %v578 = vadd.f32 %v577, %v571
    %v579 = vadd.f32 %v578, %v572
    %580 = vadd.xlane.f32.xlu0 %v579
    %v581 = vpop.xlane.xlu0 %580
    %v582 = vmul.f32 %v581, 0.0010405828
    %v583 = vld [vmem:[%s4] sm:$0xff]
    %v584 = vmul.f32 %v564, %v564
    %v585 = vsub.f32 %v582, %v584
    %v586 = vadd.f32 %v585, 1e-05
    %v587 = vrsqrt.pop %v586
    %v588 = vmul.f32 %v583, %v587
    %v589 = vld [vmem:[%s5] sm:$0xff]
    %v590 = vmul.f32 %v564, %v588
    %v591 = vsub.f32 %v589, %v590
    %593 = vset.pattern.permute.xlu0 0
    %594 = vperm.xlu0 %593, %v588
    %v595 = vpop.permute.xlu0 %594
    %v597 = vmul.f32 %v547, %v595
    %v598 = vmul.f32 %v548, %v595
    %v599 = vmul.f32 %v549, %v595
    %v600 = vmul.f32 %v550, %v595
    %v601 = vmul.f32 %v551, %v595
    %v602 = vmul.f32 %v552, %v595
    %v603 = vmul.f32 %v553, %v595
    %v604 = vmul.f32 %v554, %v595
    %606 = vset.pattern.permute.xlu0 0
    %607 = vperm.xlu0 %606, %v591
    %v608 = vpop.permute.xlu0 %607
    %v610 = vadd.f32 %v597, %v608
    %v611 = vadd.f32 %v598, %v608
    %v612 = vadd.f32 %v599, %v608
    %v613 = vadd.f32 %v600, %v608
    %v614 = vadd.f32 %v601, %v608
    %v615 = vadd.f32 %v602, %v608
    %v616 = vadd.f32 %v603, %v608
    %v617 = vadd.f32 %v604, %v608
    %v618 = vld [vmem:[%s6] sm:$0xff]
    %v619 = vld [vmem:[%s6 + $0x8] sm:$0xff]
    %v620 = vld [vmem:[%s6 + $0x10] sm:$0xff]
    %v621 = vld [vmem:[%s6 + $0x18] sm:$0xff]
    %v622 = vld [vmem:[%s7] sm:$0xff]
    %v623 = vld [vmem:[%s7 + $0x8] sm:$0xff]
    %v624 = vld [vmem:[%s7 + $0x10] sm:$0xff]
    %v625 = vld [vmem:[%s7 + $0x18] sm:$0xff]
    %627 = vset.pattern.permute.xlu0 0
    %628 = vperm.xlu0 %627, %v622
    %v629 = vpop.permute.xlu0 %628
    %632 = vset.pattern.permute.xlu0 0
    %633 = vperm.xlu0 %632, %v623
    %v634 = vpop.permute.xlu0 %633
    %637 = vset.pattern.permute.xlu0 0
    %638 = vperm.xlu0 %637, %v624
    %v639 = vpop.permute.xlu0 %638
    %642 = vset.pattern.permute.xlu0 0
    %643 = vperm.xlu0 %642, %v625
    %v644 = vpop.permute.xlu0 %643
    %vm646 = vcmask 64512
    %v648 = vsel %vm646, %v618, 0
    %v651 = vsel %vm646, %v619, 0
    %v654 = vsel %vm646, %v620, 0
    %v657 = vsel %vm646, %v621, 0
    %659 = vmatprep.subr.mxu0 0.0
    %660 = vmatpush1.msra.mxu0 0.0
    %661 = vmatprep.subr.mxu0 0.0
    %662 = vmatpush1.msra.mxu0 0.0
    %663 = vmatprep.subr.mxu0 0.0
    %664 = vmatpush1.msra.mxu0 0.0
    %665 = vmatprep.subr.mxu0 0.0
    %666 = vmatpush1.msra.mxu0 0.0
    %667 = vmatprep.subr.mxu0 0.0
    %668 = vmatpush1.msra.mxu0 0.0
    %669 = vmatprep.subr.mxu0 0.0
    %670 = vmatpush1.msra.mxu0 0.0
    %671 = vmatprep.subr.mxu0 0.0
    %672 = vmatpush1.msra.mxu0 0.0
    %673 = vmatprep.subr.mxu0 0.0
    %674 = vmatpush1.msra.mxu0 0.0
    %675 = vmatprep.subr.mxu0 0.0
    %676 = vmatpush1.msra.mxu0 0.0
    %677 = vmatprep.subr.mxu0 0.0
    %678 = vmatpush1.msra.mxu0 0.0
    %679 = vmatprep.subr.mxu0 0.0
    %680 = vmatpush1.msra.mxu0 0.0
    %681 = vmatprep.subr.mxu0 0.0
    %682 = vmatpush1.msra.mxu0 0.0
    %683 = vmatprep.subr.mxu0 0.0
    %684 = vmatpush1.msra.mxu0 0.0
    %685 = vmatprep.subr.mxu0 0.0
    %686 = vmatpush1.msra.mxu0 0.0
    %687 = vmatprep.subr.mxu0 0.0
    %688 = vmatpush1.msra.mxu0 0.0
    %689 = vmatprep.subr.mxu0 %v611
    %690 = vmatpush1.msra.mxu0 %v610
    %691 = vmatprep.subr.mxu0 0.0
    %692 = vmatpush2.msra.mxu0 0.0
    %693 = vmatprep.subr.mxu0 0.0
    %694 = vmatpush2.msra.mxu0 0.0
    %695 = vmatprep.subr.mxu0 0.0
    %696 = vmatpush2.msra.mxu0 0.0
    %697 = vmatprep.subr.mxu0 0.0
    %698 = vmatpush2.msra.mxu0 0.0
    %699 = vmatprep.subr.mxu0 0.0
    %700 = vmatpush2.msra.mxu0 0.0
    %701 = vmatprep.subr.mxu0 0.0
    %702 = vmatpush2.msra.mxu0 0.0
    %703 = vmatprep.subr.mxu0 0.0
    %704 = vmatpush2.msra.mxu0 0.0
    %705 = vmatprep.subr.mxu0 0.0
    %706 = vmatpush2.msra.mxu0 0.0
    %707 = vmatprep.subr.mxu0 0.0
    %708 = vmatpush2.msra.mxu0 0.0
    %709 = vmatprep.subr.mxu0 0.0
    %710 = vmatpush2.msra.mxu0 0.0
    %711 = vmatprep.subr.mxu0 0.0
    %712 = vmatpush2.msra.mxu0 0.0
    %713 = vmatprep.subr.mxu0 0.0
    %714 = vmatpush2.msra.mxu0 0.0
    %715 = vmatprep.subr.mxu0 0.0
    %716 = vmatpush2.msra.mxu0 0.0
    %717 = vmatprep.subr.mxu0 0.0
    %718 = vmatpush2.msra.mxu0 0.0
    %719 = vmatprep.subr.mxu0 0.0
    %720 = vmatpush2.msra.mxu0 0.0
    %721 = vmatprep.subr.mxu0 0.0
    %722 = vmatpush2.msra.mxu0 0.0
    %723 = vmatprep.mubr.f32.mxu0 0.0
    %724 = vmatmul.mubr.f32.gmra.mxu0 %v648
    %v725 = vpop.f32.mrf.mxu0
    %v726 = vadd.f32 %v629, %v725
    %v727 = vpop.f32.mrf.mxu0
    %v728 = vadd.f32 %v629, %v727
    %729 = vmatprep.mubr.f32.mxu0 0.0
    %730 = vmatmul.mubr.f32.gmra.mxu0 %v651
    %v731 = vpop.f32.mrf.mxu0
    %v732 = vadd.f32 %v634, %v731
    %v733 = vpop.f32.mrf.mxu0
    %v734 = vadd.f32 %v634, %v733
    %735 = vmatprep.mubr.f32.mxu0 0.0
    %736 = vmatmul.mubr.f32.gmra.mxu0 %v654
    %v737 = vpop.f32.mrf.mxu0
    %v738 = vadd.f32 %v639, %v737
    %v739 = vpop.f32.mrf.mxu0
    %v740 = vadd.f32 %v639, %v739
    %741 = vmatprep.mubr.f32.mxu0 0.0
    %742 = vmatmul.mubr.f32.gmra.mxu0 %v657
    %v743 = vpop.f32.mrf.mxu0
    %v744 = vadd.f32 %v644, %v743
    %v745 = vpop.f32.mrf.mxu0
    %v746 = vadd.f32 %v644, %v745
    %747 = vdwg.mxu0
    %748 = vmatprep.subr.mxu0 0.0
    %749 = vmatpush1.msra.mxu0 0.0
    %750 = vmatprep.subr.mxu0 0.0
    %751 = vmatpush1.msra.mxu0 0.0
    %752 = vmatprep.subr.mxu0 0.0
    %753 = vmatpush1.msra.mxu0 0.0
    %754 = vmatprep.subr.mxu0 0.0
    %755 = vmatpush1.msra.mxu0 0.0
    %756 = vmatprep.subr.mxu0 0.0
    %757 = vmatpush1.msra.mxu0 0.0
    %758 = vmatprep.subr.mxu0 0.0
    %759 = vmatpush1.msra.mxu0 0.0
    %760 = vmatprep.subr.mxu0 0.0
    %761 = vmatpush1.msra.mxu0 0.0
    %762 = vmatprep.subr.mxu0 0.0
    %763 = vmatpush1.msra.mxu0 0.0
    %764 = vmatprep.subr.mxu0 0.0
    %765 = vmatpush1.msra.mxu0 0.0
    %766 = vmatprep.subr.mxu0 0.0
    %767 = vmatpush1.msra.mxu0 0.0
    %768 = vmatprep.subr.mxu0 0.0
    %769 = vmatpush1.msra.mxu0 0.0
    %770 = vmatprep.subr.mxu0 0.0
    %771 = vmatpush1.msra.mxu0 0.0
    %772 = vmatprep.subr.mxu0 0.0
    %773 = vmatpush1.msra.mxu0 0.0
    %774 = vmatprep.subr.mxu0 0.0
    %775 = vmatpush1.msra.mxu0 0.0
    %776 = vmatprep.subr.mxu0 0.0
    %777 = vmatpush1.msra.mxu0 0.0
    %778 = vmatprep.subr.mxu0 %v613
    %779 = vmatpush1.msra.mxu0 %v612
    %780 = vmatprep.subr.mxu0 0.0
    %781 = vmatpush2.msra.mxu0 0.0
    %782 = vmatprep.subr.mxu0 0.0
    %783 = vmatpush2.msra.mxu0 0.0
    %784 = vmatprep.subr.mxu0 0.0
    %785 = vmatpush2.msra.mxu0 0.0
    %786 = vmatprep.subr.mxu0 0.0
    %787 = vmatpush2.msra.mxu0 0.0
    %788 = vmatprep.subr.mxu0 0.0
    %789 = vmatpush2.msra.mxu0 0.0
    %790 = vmatprep.subr.mxu0 0.0
    %791 = vmatpush2.msra.mxu0 0.0
    %792 = vmatprep.subr.mxu0 0.0
    %793 = vmatpush2.msra.mxu0 0.0
    %794 = vmatprep.subr.mxu0 0.0
    %795 = vmatpush2.msra.mxu0 0.0
    %796 = vmatprep.subr.mxu0 0.0
    %797 = vmatpush2.msra.mxu0 0.0
    %798 = vmatprep.subr.mxu0 0.0
    %799 = vmatpush2.msra.mxu0 0.0
    %800 = vmatprep.subr.mxu0 0.0
    %801 = vmatpush2.msra.mxu0 0.0
    %802 = vmatprep.subr.mxu0 0.0
    %803 = vmatpush2.msra.mxu0 0.0
    %804 = vmatprep.subr.mxu0 0.0
    %805 = vmatpush2.msra.mxu0 0.0
    %806 = vmatprep.subr.mxu0 0.0
    %807 = vmatpush2.msra.mxu0 0.0
    %808 = vmatprep.subr.mxu0 0.0
    %809 = vmatpush2.msra.mxu0 0.0
    %810 = vmatprep.subr.mxu0 0.0
    %811 = vmatpush2.msra.mxu0 0.0
    %812 = vmatprep.mubr.f32.mxu0 0.0
    %813 = vmatmul.mubr.f32.gmra.mxu0 %v648
    %v814 = vpop.f32.mrf.mxu0
    %v815 = vadd.f32 %v629, %v814
    %v816 = vpop.f32.mrf.mxu0
    %v817 = vadd.f32 %v629, %v816
    %818 = vmatprep.mubr.f32.mxu0 0.0
    %819 = vmatmul.mubr.f32.gmra.mxu0 %v651
    %v820 = vpop.f32.mrf.mxu0
    %v821 = vadd.f32 %v634, %v820
    %v822 = vpop.f32.mrf.mxu0
    %v823 = vadd.f32 %v634, %v822
    %824 = vmatprep.mubr.f32.mxu0 0.0
    %825 = vmatmul.mubr.f32.gmra.mxu0 %v654
    %v826 = vpop.f32.mrf.mxu0
    %v827 = vadd.f32 %v639, %v826
    %v828 = vpop.f32.mrf.mxu0
    %v829 = vadd.f32 %v639, %v828
    %830 = vmatprep.mubr.f32.mxu0 0.0
    %831 = vmatmul.mubr.f32.gmra.mxu0 %v657
    %v832 = vpop.f32.mrf.mxu0
    %v833 = vadd.f32 %v644, %v832
    %v834 = vpop.f32.mrf.mxu0
    %v835 = vadd.f32 %v644, %v834
    %836 = vdwg.mxu0
    %837 = vmatprep.subr.mxu0 0.0
    %838 = vmatpush1.msra.mxu0 0.0
    %839 = vmatprep.subr.mxu0 0.0
    %840 = vmatpush1.msra.mxu0 0.0
    %841 = vmatprep.subr.mxu0 0.0
    %842 = vmatpush1.msra.mxu0 0.0
    %843 = vmatprep.subr.mxu0 0.0
    %844 = vmatpush1.msra.mxu0 0.0
    %845 = vmatprep.subr.mxu0 0.0
    %846 = vmatpush1.msra.mxu0 0.0
    %847 = vmatprep.subr.mxu0 0.0
    %848 = vmatpush1.msra.mxu0 0.0
    %849 = vmatprep.subr.mxu0 0.0
    %850 = vmatpush1.msra.mxu0 0.0
    %851 = vmatprep.subr.mxu0 0.0
    %852 = vmatpush1.msra.mxu0 0.0
    %853 = vmatprep.subr.mxu0 0.0
    %854 = vmatpush1.msra.mxu0 0.0
    %855 = vmatprep.subr.mxu0 0.0
    %856 = vmatpush1.msra.mxu0 0.0
    %857 = vmatprep.subr.mxu0 0.0
    %858 = vmatpush1.msra.mxu0 0.0
    %859 = vmatprep.subr.mxu0 0.0
    %860 = vmatpush1.msra.mxu0 0.0
    %861 = vmatprep.subr.mxu0 0.0
    %862 = vmatpush1.msra.mxu0 0.0
    %863 = vmatprep.subr.mxu0 0.0
    %864 = vmatpush1.msra.mxu0 0.0
    %865 = vmatprep.subr.mxu0 0.0
    %866 = vmatpush1.msra.mxu0 0.0
    %867 = vmatprep.subr.mxu0 %v615
    %868 = vmatpush1.msra.mxu0 %v614
    %869 = vmatprep.subr.mxu0 0.0
    %870 = vmatpush2.msra.mxu0 0.0
    %871 = vmatprep.subr.mxu0 0.0
    %872 = vmatpush2.msra.mxu0 0.0
    %873 = vmatprep.subr.mxu0 0.0
    %874 = vmatpush2.msra.mxu0 0.0
    %875 = vmatprep.subr.mxu0 0.0
    %876 = vmatpush2.msra.mxu0 0.0
    %877 = vmatprep.subr.mxu0 0.0
    %878 = vmatpush2.msra.mxu0 0.0
    %879 = vmatprep.subr.mxu0 0.0
    %880 = vmatpush2.msra.mxu0 0.0
    %881 = vmatprep.subr.mxu0 0.0
    %882 = vmatpush2.msra.mxu0 0.0
    %883 = vmatprep.subr.mxu0 0.0
    %884 = vmatpush2.msra.mxu0 0.0
    %885 = vmatprep.subr.mxu0 0.0
    %886 = vmatpush2.msra.mxu0 0.0
    %887 = vmatprep.subr.mxu0 0.0
    %888 = vmatpush2.msra.mxu0 0.0
    %889 = vmatprep.subr.mxu0 0.0
    %890 = vmatpush2.msra.mxu0 0.0
    %891 = vmatprep.subr.mxu0 0.0
    %892 = vmatpush2.msra.mxu0 0.0
    %893 = vmatprep.subr.mxu0 0.0
    %894 = vmatpush2.msra.mxu0 0.0
    %895 = vmatprep.subr.mxu0 0.0
    %896 = vmatpush2.msra.mxu0 0.0
    %897 = vmatprep.subr.mxu0 0.0
    %898 = vmatpush2.msra.mxu0 0.0
    %899 = vmatprep.subr.mxu0 0.0
    %900 = vmatpush2.msra.mxu0 0.0
    %901 = vmatprep.mubr.f32.mxu0 0.0
    %902 = vmatmul.mubr.f32.gmra.mxu0 %v648
    %v903 = vpop.f32.mrf.mxu0
    %v904 = vadd.f32 %v629, %v903
    %v905 = vpop.f32.mrf.mxu0
    %v906 = vadd.f32 %v629, %v905
    %907 = vmatprep.mubr.f32.mxu0 0.0
    %908 = vmatmul.mubr.f32.gmra.mxu0 %v651
    %v909 = vpop.f32.mrf.mxu0
    %v910 = vadd.f32 %v634, %v909
    %v911 = vpop.f32.mrf.mxu0
    %v912 = vadd.f32 %v634, %v911
    %913 = vmatprep.mubr.f32.mxu0 0.0
    %914 = vmatmul.mubr.f32.gmra.mxu0 %v654
    %v915 = vpop.f32.mrf.mxu0
    %v916 = vadd.f32 %v639, %v915
    %v917 = vpop.f32.mrf.mxu0
    %v918 = vadd.f32 %v639, %v917
    %919 = vmatprep.mubr.f32.mxu0 0.0
    %920 = vmatmul.mubr.f32.gmra.mxu0 %v657
    %v921 = vpop.f32.mrf.mxu0
    %v922 = vadd.f32 %v644, %v921
    %v923 = vpop.f32.mrf.mxu0
    %v924 = vadd.f32 %v644, %v923
    %925 = vdwg.mxu0
    %926 = vmatprep.subr.mxu0 0.0
    %927 = vmatpush1.msra.mxu0 0.0
    %928 = vmatprep.subr.mxu0 0.0
    %929 = vmatpush1.msra.mxu0 0.0
    %930 = vmatprep.subr.mxu0 0.0
    %931 = vmatpush1.msra.mxu0 0.0
    %932 = vmatprep.subr.mxu0 0.0
    %933 = vmatpush1.msra.mxu0 0.0
    %934 = vmatprep.subr.mxu0 0.0
    %935 = vmatpush1.msra.mxu0 0.0
    %936 = vmatprep.subr.mxu0 0.0
    %937 = vmatpush1.msra.mxu0 0.0
    %938 = vmatprep.subr.mxu0 0.0
    %939 = vmatpush1.msra.mxu0 0.0
    %940 = vmatprep.subr.mxu0 0.0
    %941 = vmatpush1.msra.mxu0 0.0
    %942 = vmatprep.subr.mxu0 0.0
    %943 = vmatpush1.msra.mxu0 0.0
    %944 = vmatprep.subr.mxu0 0.0
    %945 = vmatpush1.msra.mxu0 0.0
    %946 = vmatprep.subr.mxu0 0.0
    %947 = vmatpush1.msra.mxu0 0.0
    %948 = vmatprep.subr.mxu0 0.0
    %949 = vmatpush1.msra.mxu0 0.0
    %950 = vmatprep.subr.mxu0 0.0
    %951 = vmatpush1.msra.mxu0 0.0
    %952 = vmatprep.subr.mxu0 0.0
    %953 = vmatpush1.msra.mxu0 0.0
    %954 = vmatprep.subr.mxu0 0.0
    %955 = vmatpush1.msra.mxu0 0.0
    %956 = vmatprep.subr.mxu0 %v617
    %957 = vmatpush1.msra.mxu0 %v616
    %958 = vmatprep.subr.mxu0 0.0
    %959 = vmatpush2.msra.mxu0 0.0
    %960 = vmatprep.subr.mxu0 0.0
    %961 = vmatpush2.msra.mxu0 0.0
    %962 = vmatprep.subr.mxu0 0.0
    %963 = vmatpush2.msra.mxu0 0.0
    %964 = vmatprep.subr.mxu0 0.0
    %965 = vmatpush2.msra.mxu0 0.0
    %966 = vmatprep.subr.mxu0 0.0
    %967 = vmatpush2.msra.mxu0 0.0
    %968 = vmatprep.subr.mxu0 0.0
    %969 = vmatpush2.msra.mxu0 0.0
    %970 = vmatprep.subr.mxu0 0.0
    %971 = vmatpush2.msra.mxu0 0.0
    %972 = vmatprep.subr.mxu0 0.0
    %973 = vmatpush2.msra.mxu0 0.0
    %974 = vmatprep.subr.mxu0 0.0
    %975 = vmatpush2.msra.mxu0 0.0
    %976 = vmatprep.subr.mxu0 0.0
    %977 = vmatpush2.msra.mxu0 0.0
    %978 = vmatprep.subr.mxu0 0.0
    %979 = vmatpush2.msra.mxu0 0.0
    %980 = vmatprep.subr.mxu0 0.0
    %981 = vmatpush2.msra.mxu0 0.0
    %982 = vmatprep.subr.mxu0 0.0
    %983 = vmatpush2.msra.mxu0 0.0
    %984 = vmatprep.subr.mxu0 0.0
    %985 = vmatpush2.msra.mxu0 0.0
    %986 = vmatprep.subr.mxu0 0.0
    %987 = vmatpush2.msra.mxu0 0.0
    %988 = vmatprep.subr.mxu0 0.0
    %989 = vmatpush2.msra.mxu0 0.0
    %990 = vmatprep.mubr.f32.mxu0 0.0
    %991 = vmatmul.mubr.f32.gmra.mxu0 %v648
    %v992 = vpop.f32.mrf.mxu0
    %v993 = vadd.f32 %v629, %v992
    %v994 = vpop.f32.mrf.mxu0
    %v995 = vadd.f32 %v629, %v994
    %996 = vmatprep.mubr.f32.mxu0 0.0
    %997 = vmatmul.mubr.f32.gmra.mxu0 %v651
    %v998 = vpop.f32.mrf.mxu0
    %v999 = vadd.f32 %v634, %v998
    %v1000 = vpop.f32.mrf.mxu0
    %v1001 = vadd.f32 %v634, %v1000
    %1002 = vmatprep.mubr.f32.mxu0 0.0
    %1003 = vmatmul.mubr.f32.gmra.mxu0 %v654
    %v1004 = vpop.f32.mrf.mxu0
    %v1005 = vadd.f32 %v639, %v1004
    %v1006 = vpop.f32.mrf.mxu0
    %v1007 = vadd.f32 %v639, %v1006
    %1008 = vmatprep.mubr.f32.mxu0 0.0
    %1009 = vmatmul.mubr.f32.gmra.mxu0 %v657
    %v1010 = vpop.f32.mrf.mxu0
    %v1011 = vadd.f32 %v644, %v1010
    %v1012 = vpop.f32.mrf.mxu0
    %v1013 = vadd.f32 %v644, %v1012
    %1014 = vdwg.mxu0
    %v1015 = vmul.f32 %v726, 0.5
    %v1016 = vmul.f32 %v728, 0.5
    %v1017 = vmul.f32 %v815, 0.5
    %v1018 = vmul.f32 %v817, 0.5
    %v1019 = vmul.f32 %v904, 0.5
    %v1020 = vmul.f32 %v906, 0.5
    %v1021 = vmul.f32 %v993, 0.5
    %v1022 = vmul.f32 %v995, 0.5
    %v1023 = vmul.f32 %v732, 0.5
    %v1024 = vmul.f32 %v734, 0.5
    %v1025 = vmul.f32 %v821, 0.5
    %v1026 = vmul.f32 %v823, 0.5
    %v1027 = vmul.f32 %v910, 0.5
    %v1028 = vmul.f32 %v912, 0.5
    %v1029 = vmul.f32 %v999, 0.5
    %v1030 = vmul.f32 %v1001, 0.5
    %v1031 = vmul.f32 %v738, 0.5
    %v1032 = vmul.f32 %v740, 0.5
    %v1033 = vmul.f32 %v827, 0.5
    %v1034 = vmul.f32 %v829, 0.5
    %v1035 = vmul.f32 %v916, 0.5
    %v1036 = vmul.f32 %v918, 0.5
    %v1037 = vmul.f32 %v1005, 0.5
    %v1038 = vmul.f32 %v1007, 0.5
    %v1039 = vmul.f32 %v744, 0.5
    %v1040 = vmul.f32 %v746, 0.5
    %v1041 = vmul.f32 %v833, 0.5
    %v1042 = vmul.f32 %v835, 0.5
    %v1043 = vmul.f32 %v922, 0.5
    %v1044 = vmul.f32 %v924, 0.5
    %v1045 = vmul.f32 %v1011, 0.5
    %v1046 = vmul.f32 %v1013, 0.5
    %v1047 = vmul.f32 %v726, 0.70710677
    %v1048 = vmul.f32 %v728, 0.70710677
    %v1049 = vmul.f32 %v815, 0.70710677
    %v1050 = vmul.f32 %v817, 0.70710677
    %v1051 = vmul.f32 %v904, 0.70710677
    %v1052 = vmul.f32 %v906, 0.70710677
    %v1053 = vmul.f32 %v993, 0.70710677
    %v1054 = vmul.f32 %v995, 0.70710677
    %v1055 = vmul.f32 %v732, 0.70710677
    %v1056 = vmul.f32 %v734, 0.70710677
    %v1057 = vmul.f32 %v821, 0.70710677
    %v1058 = vmul.f32 %v823, 0.70710677
    %v1059 = vmul.f32 %v910, 0.70710677
    %v1060 = vmul.f32 %v912, 0.70710677
    %v1061 = vmul.f32 %v999, 0.70710677
    %v1062 = vmul.f32 %v1001, 0.70710677
    %v1063 = vmul.f32 %v738, 0.70710677
    %v1064 = vmul.f32 %v740, 0.70710677
    %v1065 = vmul.f32 %v827, 0.70710677
    %v1066 = vmul.f32 %v829, 0.70710677
    %v1067 = vmul.f32 %v916, 0.70710677
    %v1068 = vmul.f32 %v918, 0.70710677
    %v1069 = vmul.f32 %v1005, 0.70710677
    %v1070 = vmul.f32 %v1007, 0.70710677
    %v1071 = vmul.f32 %v744, 0.70710677
    %v1072 = vmul.f32 %v746, 0.70710677
    %v1073 = vmul.f32 %v833, 0.70710677
    %v1074 = vmul.f32 %v835, 0.70710677
    %v1075 = vmul.f32 %v922, 0.70710677
    %v1076 = vmul.f32 %v924, 0.70710677
    %v1077 = vmul.f32 %v1011, 0.70710677
    %v1078 = vmul.f32 %v1013, 0.70710677
    %v1079 = verf.f32.pop %v1047
    %v1080 = verf.f32.pop %v1048
    %v1081 = verf.f32.pop %v1049
    %v1082 = verf.f32.pop %v1050
    %v1083 = verf.f32.pop %v1051
    %v1084 = verf.f32.pop %v1052
    %v1085 = verf.f32.pop %v1053
    %v1086 = verf.f32.pop %v1054
    %v1087 = verf.f32.pop %v1055
    %v1088 = verf.f32.pop %v1056
    %v1089 = verf.f32.pop %v1057
    %v1090 = verf.f32.pop %v1058
    %v1091 = verf.f32.pop %v1059
    %v1092 = verf.f32.pop %v1060
    %v1093 = verf.f32.pop %v1061
    %v1094 = verf.f32.pop %v1062
    %v1095 = verf.f32.pop %v1063
    %v1096 = verf.f32.pop %v1064
    %v1097 = verf.f32.pop %v1065
    %v1098 = verf.f32.pop %v1066
    %v1099 = verf.f32.pop %v1067
    %v1100 = verf.f32.pop %v1068
    %v1101 = verf.f32.pop %v1069
    %v1102 = verf.f32.pop %v1070
    %v1103 = verf.f32.pop %v1071
    %v1104 = verf.f32.pop %v1072
    %v1105 = verf.f32.pop %v1073
    %v1106 = verf.f32.pop %v1074
    %v1107 = verf.f32.pop %v1075
    %v1108 = verf.f32.pop %v1076
    %v1109 = verf.f32.pop %v1077
    %v1110 = verf.f32.pop %v1078
    %v1111 = vadd.f32 %v1079, 1.0
    %v1112 = vadd.f32 %v1080, 1.0
    %v1113 = vadd.f32 %v1081, 1.0
    %v1114 = vadd.f32 %v1082, 1.0
    %v1115 = vadd.f32 %v1083, 1.0
    %v1116 = vadd.f32 %v1084, 1.0
    %v1117 = vadd.f32 %v1085, 1.0
    %v1118 = vadd.f32 %v1086, 1.0
    %v1119 = vadd.f32 %v1087, 1.0
    %v1120 = vadd.f32 %v1088, 1.0
    %v1121 = vadd.f32 %v1089, 1.0
    %v1122 = vadd.f32 %v1090, 1.0
    %v1123 = vadd.f32 %v1091, 1.0
    %v1124 = vadd.f32 %v1092, 1.0
    %v1125 = vadd.f32 %v1093, 1.0
    %v1126 = vadd.f32 %v1094, 1.0
    %v1127 = vadd.f32 %v1095, 1.0
    %v1128 = vadd.f32 %v1096, 1.0
    %v1129 = vadd.f32 %v1097, 1.0
    %v1130 = vadd.f32 %v1098, 1.0
    %v1131 = vadd.f32 %v1099, 1.0
    %v1132 = vadd.f32 %v1100, 1.0
    %v1133 = vadd.f32 %v1101, 1.0
    %v1134 = vadd.f32 %v1102, 1.0
    %v1135 = vadd.f32 %v1103, 1.0
    %v1136 = vadd.f32 %v1104, 1.0
    %v1137 = vadd.f32 %v1105, 1.0
    %v1138 = vadd.f32 %v1106, 1.0
    %v1139 = vadd.f32 %v1107, 1.0
    %v1140 = vadd.f32 %v1108, 1.0
    %v1141 = vadd.f32 %v1109, 1.0
    %v1142 = vadd.f32 %v1110, 1.0
    %v1143 = vmul.f32 %v1015, %v1111
    %v1144 = vmul.f32 %v1016, %v1112
    %v1145 = vmul.f32 %v1017, %v1113
    %v1146 = vmul.f32 %v1018, %v1114
    %v1147 = vmul.f32 %v1019, %v1115
    %v1148 = vmul.f32 %v1020, %v1116
    %v1149 = vmul.f32 %v1021, %v1117
    %v1150 = vmul.f32 %v1022, %v1118
    %v1151 = vmul.f32 %v1023, %v1119
    %v1152 = vmul.f32 %v1024, %v1120
    %v1153 = vmul.f32 %v1025, %v1121
    %v1154 = vmul.f32 %v1026, %v1122
    %v1155 = vmul.f32 %v1027, %v1123
    %v1156 = vmul.f32 %v1028, %v1124
    %v1157 = vmul.f32 %v1029, %v1125
    %v1158 = vmul.f32 %v1030, %v1126
    %v1159 = vmul.f32 %v1031, %v1127
    %v1160 = vmul.f32 %v1032, %v1128
    %v1161 = vmul.f32 %v1033, %v1129
    %v1162 = vmul.f32 %v1034, %v1130
    %v1163 = vmul.f32 %v1035, %v1131
    %v1164 = vmul.f32 %v1036, %v1132
    %v1165 = vmul.f32 %v1037, %v1133
    %v1166 = vmul.f32 %v1038, %v1134
    %v1167 = vmul.f32 %v1039, %v1135
    %v1168 = vmul.f32 %v1040, %v1136
    %v1169 = vmul.f32 %v1041, %v1137
    %v1170 = vmul.f32 %v1042, %v1138
    %v1171 = vmul.f32 %v1043, %v1139
    %v1172 = vmul.f32 %v1044, %v1140
    %v1173 = vmul.f32 %v1045, %v1141
    %v1174 = vmul.f32 %v1046, %v1142
    %v1175 = vld [vmem:[%s8] sm:$0xff]
    %v1176 = vld [vmem:[%s8 + $0x8] sm:$0xff]
    %v1177 = vld [vmem:[%s9] sm:$0xff]
    %v1178 = vld [vmem:[%s9 + $0x8] sm:$0xff]
    %1180 = vset.pattern.permute.xlu0 0
    %1181 = vperm.xlu0 %1180, %v1177
    %v1182 = vpop.permute.xlu0 %1181
    %1185 = vset.pattern.permute.xlu0 0
    %1186 = vperm.xlu0 %1185, %v1178
    %v1187 = vpop.permute.xlu0 %1186
    %vm1189 = vcmask 326656
    %v1191 = vsel %vm1189, %v1175, 0
    %v1194 = vsel %vm1189, %v1176, 0
    %1196 = vmatprep.subr.mxu0 0.0
    %1197 = vmatpush1.msra.mxu0 0.0
    %1198 = vmatprep.subr.mxu0 0.0
    %1199 = vmatpush1.msra.mxu0 0.0
    %1200 = vmatprep.subr.mxu0 0.0
    %1201 = vmatpush1.msra.mxu0 0.0
    %1202 = vmatprep.subr.mxu0 0.0
    %1203 = vmatpush1.msra.mxu0 0.0
    %1204 = vmatprep.subr.mxu0 0.0
    %1205 = vmatpush1.msra.mxu0 0.0
    %1206 = vmatprep.subr.mxu0 0.0
    %1207 = vmatpush1.msra.mxu0 0.0
    %1208 = vmatprep.subr.mxu0 0.0
    %1209 = vmatpush1.msra.mxu0 0.0
    %1210 = vmatprep.subr.mxu0 0.0
    %1211 = vmatpush1.msra.mxu0 0.0
    %1212 = vmatprep.subr.mxu0 0.0
    %1213 = vmatpush1.msra.mxu0 0.0
    %1214 = vmatprep.subr.mxu0 0.0
    %1215 = vmatpush1.msra.mxu0 0.0
    %1216 = vmatprep.subr.mxu0 0.0
    %1217 = vmatpush1.msra.mxu0 0.0
    %1218 = vmatprep.subr.mxu0 %v213
    %1219 = vmatpush1.msra.mxu0 %v212
    %1220 = vmatprep.subr.mxu0 %v1168
    %1221 = vmatpush1.msra.mxu0 %v1167
    %1222 = vmatprep.subr.mxu0 %v1160
    %1223 = vmatpush1.msra.mxu0 %v1159
    %1224 = vmatprep.subr.mxu0 %v1152
    %1225 = vmatpush1.msra.mxu0 %v1151
    %1226 = vmatprep.subr.mxu0 %v1144
    %1227 = vmatpush1.msra.mxu0 %v1143
    %1228 = vmatprep.subr.mxu0 0.0
    %1229 = vmatpush2.msra.mxu0 0.0
    %1230 = vmatprep.subr.mxu0 0.0
    %1231 = vmatpush2.msra.mxu0 0.0
    %1232 = vmatprep.subr.mxu0 0.0
    %1233 = vmatpush2.msra.mxu0 0.0
    %1234 = vmatprep.subr.mxu0 0.0
    %1235 = vmatpush2.msra.mxu0 0.0
    %1236 = vmatprep.subr.mxu0 0.0
    %1237 = vmatpush2.msra.mxu0 0.0
    %1238 = vmatprep.subr.mxu0 0.0
    %1239 = vmatpush2.msra.mxu0 0.0
    %1240 = vmatprep.subr.mxu0 0.0
    %1241 = vmatpush2.msra.mxu0 0.0
    %1242 = vmatprep.subr.mxu0 0.0
    %1243 = vmatpush2.msra.mxu0 0.0
    %1244 = vmatprep.subr.mxu0 0.0
    %1245 = vmatpush2.msra.mxu0 0.0
    %1246 = vmatprep.subr.mxu0 0.0
    %1247 = vmatpush2.msra.mxu0 0.0
    %1248 = vmatprep.subr.mxu0 0.0
    %1249 = vmatpush2.msra.mxu0 0.0
    %1250 = vmatprep.subr.mxu0 0.0
    %1251 = vmatpush2.msra.mxu0 0.0
    %1252 = vmatprep.subr.mxu0 0.0
    %1253 = vmatpush2.msra.mxu0 0.0
    %1254 = vmatprep.subr.mxu0 0.0
    %1255 = vmatpush2.msra.mxu0 0.0
    %1256 = vmatprep.subr.mxu0 0.0
    %1257 = vmatpush2.msra.mxu0 0.0
    %1258 = vmatprep.subr.mxu0 0.0
    %1259 = vmatpush2.msra.mxu0 0.0
    %1260 = vmatprep.mubr.f32.mxu0 0.0
    %1261 = vmatmul.mubr.f32.gmra.mxu0 %v1191
    %v1262 = vpop.f32.mrf.mxu0
    %v1263 = vadd.f32 %v1182, %v1262
    %v1264 = vpop.f32.mrf.mxu0
    %v1265 = vadd.f32 %v1182, %v1264
    %1266 = vmatprep.mubr.f32.mxu0 0.0
    %1267 = vmatmul.mubr.f32.gmra.mxu0 %v1194
    %v1268 = vpop.f32.mrf.mxu0
    %v1269 = vadd.f32 %v1187, %v1268
    %v1270 = vpop.f32.mrf.mxu0
    %v1271 = vadd.f32 %v1187, %v1270
    %1272 = vdwg.mxu0
    %1273 = vmatprep.subr.mxu0 0.0
    %1274 = vmatpush1.msra.mxu0 0.0
    %1275 = vmatprep.subr.mxu0 0.0
    %1276 = vmatpush1.msra.mxu0 0.0
    %1277 = vmatprep.subr.mxu0 0.0
    %1278 = vmatpush1.msra.mxu0 0.0
    %1279 = vmatprep.subr.mxu0 0.0
    %1280 = vmatpush1.msra.mxu0 0.0
    %1281 = vmatprep.subr.mxu0 0.0
    %1282 = vmatpush1.msra.mxu0 0.0
    %1283 = vmatprep.subr.mxu0 0.0
    %1284 = vmatpush1.msra.mxu0 0.0
    %1285 = vmatprep.subr.mxu0 0.0
    %1286 = vmatpush1.msra.mxu0 0.0
    %1287 = vmatprep.subr.mxu0 0.0
    %1288 = vmatpush1.msra.mxu0 0.0
    %1289 = vmatprep.subr.mxu0 0.0
    %1290 = vmatpush1.msra.mxu0 0.0
    %1291 = vmatprep.subr.mxu0 0.0
    %1292 = vmatpush1.msra.mxu0 0.0
    %1293 = vmatprep.subr.mxu0 0.0
    %1294 = vmatpush1.msra.mxu0 0.0
    %1295 = vmatprep.subr.mxu0 0.0
    %1296 = vmatpush1.msra.mxu0 0.0
    %1297 = vmatprep.subr.mxu0 %v1170
    %1298 = vmatpush1.msra.mxu0 %v1169
    %1299 = vmatprep.subr.mxu0 %v1162
    %1300 = vmatpush1.msra.mxu0 %v1161
    %1301 = vmatprep.subr.mxu0 %v1154
    %1302 = vmatpush1.msra.mxu0 %v1153
    %1303 = vmatprep.subr.mxu0 %v1146
    %1304 = vmatpush1.msra.mxu0 %v1145
    %1305 = vmatprep.subr.mxu0 0.0
    %1306 = vmatpush2.msra.mxu0 0.0
    %1307 = vmatprep.subr.mxu0 0.0
    %1308 = vmatpush2.msra.mxu0 0.0
    %1309 = vmatprep.subr.mxu0 0.0
    %1310 = vmatpush2.msra.mxu0 0.0
    %1311 = vmatprep.subr.mxu0 0.0
    %1312 = vmatpush2.msra.mxu0 0.0
    %1313 = vmatprep.subr.mxu0 0.0
    %1314 = vmatpush2.msra.mxu0 0.0
    %1315 = vmatprep.subr.mxu0 0.0
    %1316 = vmatpush2.msra.mxu0 0.0
    %1317 = vmatprep.subr.mxu0 0.0
    %1318 = vmatpush2.msra.mxu0 0.0
    %1319 = vmatprep.subr.mxu0 0.0
    %1320 = vmatpush2.msra.mxu0 0.0
    %1321 = vmatprep.subr.mxu0 0.0
    %1322 = vmatpush2.msra.mxu0 0.0
    %1323 = vmatprep.subr.mxu0 0.0
    %1324 = vmatpush2.msra.mxu0 0.0
    %1325 = vmatprep.subr.mxu0 0.0
    %1326 = vmatpush2.msra.mxu0 0.0
    %1327 = vmatprep.subr.mxu0 0.0
    %1328 = vmatpush2.msra.mxu0 0.0
    %1329 = vmatprep.subr.mxu0 0.0
    %1330 = vmatpush2.msra.mxu0 0.0
    %1331 = vmatprep.subr.mxu0 0.0
    %1332 = vmatpush2.msra.mxu0 0.0
    %1333 = vmatprep.subr.mxu0 0.0
    %1334 = vmatpush2.msra.mxu0 0.0
    %1335 = vmatprep.subr.mxu0 0.0
    %1336 = vmatpush2.msra.mxu0 0.0
    %1337 = vmatprep.mubr.f32.mxu0 0.0
    %1338 = vmatmul.mubr.f32.gmra.mxu0 %v1191
    %v1339 = vpop.f32.mrf.mxu0
    %v1340 = vadd.f32 %v1182, %v1339
    %v1341 = vpop.f32.mrf.mxu0
    %v1342 = vadd.f32 %v1182, %v1341
    %1343 = vmatprep.mubr.f32.mxu0 0.0
    %1344 = vmatmul.mubr.f32.gmra.mxu0 %v1194
    %v1345 = vpop.f32.mrf.mxu0
    %v1346 = vadd.f32 %v1187, %v1345
    %v1347 = vpop.f32.mrf.mxu0
    %v1348 = vadd.f32 %v1187, %v1347
    %1349 = vdwg.mxu0
    %1350 = vmatprep.subr.mxu0 0.0
    %1351 = vmatpush1.msra.mxu0 0.0
    %1352 = vmatprep.subr.mxu0 0.0
    %1353 = vmatpush1.msra.mxu0 0.0
    %1354 = vmatprep.subr.mxu0 0.0
    %1355 = vmatpush1.msra.mxu0 0.0
    %1356 = vmatprep.subr.mxu0 0.0
    %1357 = vmatpush1.msra.mxu0 0.0
    %1358 = vmatprep.subr.mxu0 0.0
    %1359 = vmatpush1.msra.mxu0 0.0
    %1360 = vmatprep.subr.mxu0 0.0
    %1361 = vmatpush1.msra.mxu0 0.0
    %1362 = vmatprep.subr.mxu0 0.0
    %1363 = vmatpush1.msra.mxu0 0.0
    %1364 = vmatprep.subr.mxu0 0.0
    %1365 = vmatpush1.msra.mxu0 0.0
    %1366 = vmatprep.subr.mxu0 0.0
    %1367 = vmatpush1.msra.mxu0 0.0
    %1368 = vmatprep.subr.mxu0 0.0
    %1369 = vmatpush1.msra.mxu0 0.0
    %1370 = vmatprep.subr.mxu0 0.0
    %1371 = vmatpush1.msra.mxu0 0.0
    %1372 = vmatprep.subr.mxu0 0.0
    %1373 = vmatpush1.msra.mxu0 0.0
    %1374 = vmatprep.subr.mxu0 %v1172
    %1375 = vmatpush1.msra.mxu0 %v1171
    %1376 = vmatprep.subr.mxu0 %v1164
    %1377 = vmatpush1.msra.mxu0 %v1163
    %1378 = vmatprep.subr.mxu0 %v1156
    %1379 = vmatpush1.msra.mxu0 %v1155
    %1380 = vmatprep.subr.mxu0 %v1148
    %1381 = vmatpush1.msra.mxu0 %v1147
    %1382 = vmatprep.subr.mxu0 0.0
    %1383 = vmatpush2.msra.mxu0 0.0
    %1384 = vmatprep.subr.mxu0 0.0
    %1385 = vmatpush2.msra.mxu0 0.0
    %1386 = vmatprep.subr.mxu0 0.0
    %1387 = vmatpush2.msra.mxu0 0.0
    %1388 = vmatprep.subr.mxu0 0.0
    %1389 = vmatpush2.msra.mxu0 0.0
    %1390 = vmatprep.subr.mxu0 0.0
    %1391 = vmatpush2.msra.mxu0 0.0
    %1392 = vmatprep.subr.mxu0 0.0
    %1393 = vmatpush2.msra.mxu0 0.0
    %1394 = vmatprep.subr.mxu0 0.0
    %1395 = vmatpush2.msra.mxu0 0.0
    %1396 = vmatprep.subr.mxu0 0.0
    %1397 = vmatpush2.msra.mxu0 0.0
    %1398 = vmatprep.subr.mxu0 0.0
    %1399 = vmatpush2.msra.mxu0 0.0
    %1400 = vmatprep.subr.mxu0 0.0
    %1401 = vmatpush2.msra.mxu0 0.0
    %1402 = vmatprep.subr.mxu0 0.0
    %1403 = vmatpush2.msra.mxu0 0.0
    %1404 = vmatprep.subr.mxu0 0.0
    %1405 = vmatpush2.msra.mxu0 0.0
    %1406 = vmatprep.subr.mxu0 0.0
    %1407 = vmatpush2.msra.mxu0 0.0
    %1408 = vmatprep.subr.mxu0 0.0
    %1409 = vmatpush2.msra.mxu0 0.0
    %1410 = vmatprep.subr.mxu0 0.0
    %1411 = vmatpush2.msra.mxu0 0.0
    %1412 = vmatprep.subr.mxu0 0.0
    %1413 = vmatpush2.msra.mxu0 0.0
    %1414 = vmatprep.mubr.f32.mxu0 0.0
    %1415 = vmatmul.mubr.f32.gmra.mxu0 %v1191
    %v1416 = vpop.f32.mrf.mxu0
    %v1417 = vadd.f32 %v1182, %v1416
    %v1418 = vpop.f32.mrf.mxu0
    %v1419 = vadd.f32 %v1182, %v1418
    %1420 = vmatprep.mubr.f32.mxu0 0.0
    %1421 = vmatmul.mubr.f32.gmra.mxu0 %v1194
    %v1422 = vpop.f32.mrf.mxu0
    %v1423 = vadd.f32 %v1187, %v1422
    %v1424 = vpop.f32.mrf.mxu0
    %v1425 = vadd.f32 %v1187, %v1424
    %1426 = vdwg.mxu0
    %1427 = vmatprep.subr.mxu0 0.0
    %1428 = vmatpush1.msra.mxu0 0.0
    %1429 = vmatprep.subr.mxu0 0.0
    %1430 = vmatpush1.msra.mxu0 0.0
    %1431 = vmatprep.subr.mxu0 0.0
    %1432 = vmatpush1.msra.mxu0 0.0
    %1433 = vmatprep.subr.mxu0 0.0
    %1434 = vmatpush1.msra.mxu0 0.0
    %1435 = vmatprep.subr.mxu0 0.0
    %1436 = vmatpush1.msra.mxu0 0.0
    %1437 = vmatprep.subr.mxu0 0.0
    %1438 = vmatpush1.msra.mxu0 0.0
    %1439 = vmatprep.subr.mxu0 0.0
    %1440 = vmatpush1.msra.mxu0 0.0
    %1441 = vmatprep.subr.mxu0 0.0
    %1442 = vmatpush1.msra.mxu0 0.0
    %1443 = vmatprep.subr.mxu0 0.0
    %1444 = vmatpush1.msra.mxu0 0.0
    %1445 = vmatprep.subr.mxu0 0.0
    %1446 = vmatpush1.msra.mxu0 0.0
    %1447 = vmatprep.subr.mxu0 0.0
    %1448 = vmatpush1.msra.mxu0 0.0
    %1449 = vmatprep.subr.mxu0 0.0
    %1450 = vmatpush1.msra.mxu0 0.0
    %1451 = vmatprep.subr.mxu0 %v1174
    %1452 = vmatpush1.msra.mxu0 %v1173
    %1453 = vmatprep.subr.mxu0 %v1166
    %1454 = vmatpush1.msra.mxu0 %v1165
    %1455 = vmatprep.subr.mxu0 %v1158
    %1456 = vmatpush1.msra.mxu0 %v1157
    %1457 = vmatprep.subr.mxu0 %v1150
    %1458 = vmatpush1.msra.mxu0 %v1149
    %1459 = vmatprep.subr.mxu0 0.0
    %1460 = vmatpush2.msra.mxu0 0.0
    %1461 = vmatprep.subr.mxu0 0.0
    %1462 = vmatpush2.msra.mxu0 0.0
    %1463 = vmatprep.subr.mxu0 0.0
    %1464 = vmatpush2.msra.mxu0 0.0
    %1465 = vmatprep.subr.mxu0 0.0
    %1466 = vmatpush2.msra.mxu0 0.0
    %1467 = vmatprep.subr.mxu0 0.0
    %1468 = vmatpush2.msra.mxu0 0.0
    %1469 = vmatprep.subr.mxu0 0.0
    %1470 = vmatpush2.msra.mxu0 0.0
    %1471 = vmatprep.subr.mxu0 0.0
    %1472 = vmatpush2.msra.mxu0 0.0
    %1473 = vmatprep.subr.mxu0 0.0
    %1474 = vmatpush2.msra.mxu0 0.0
    %1475 = vmatprep.subr.mxu0 0.0
    %1476 = vmatpush2.msra.mxu0 0.0
    %1477 = vmatprep.subr.mxu0 0.0
    %1478 = vmatpush2.msra.mxu0 0.0
    %1479 = vmatprep.subr.mxu0 0.0
    %1480 = vmatpush2.msra.mxu0 0.0
    %1481 = vmatprep.subr.mxu0 0.0
    %1482 = vmatpush2.msra.mxu0 0.0
    %1483 = vmatprep.subr.mxu0 0.0
    %1484 = vmatpush2.msra.mxu0 0.0
    %1485 = vmatprep.subr.mxu0 0.0
    %1486 = vmatpush2.msra.mxu0 0.0
    %1487 = vmatprep.subr.mxu0 0.0
    %1488 = vmatpush2.msra.mxu0 0.0
    %1489 = vmatprep.subr.mxu0 0.0
    %1490 = vmatpush2.msra.mxu0 0.0
    %1491 = vmatprep.mubr.f32.mxu0 0.0
    %1492 = vmatmul.mubr.f32.gmra.mxu0 %v1191
    %v1493 = vpop.f32.mrf.mxu0
    %v1494 = vadd.f32 %v1182, %v1493
    %v1495 = vpop.f32.mrf.mxu0
    %v1496 = vadd.f32 %v1182, %v1495
    %1497 = vmatprep.mubr.f32.mxu0 0.0
    %1498 = vmatmul.mubr.f32.gmra.mxu0 %v1194
    %v1499 = vpop.f32.mrf.mxu0
    %v1500 = vadd.f32 %v1187, %v1499
    %v1501 = vpop.f32.mrf.mxu0
    %v1502 = vadd.f32 %v1187, %v1501
    %1503 = vdwg.mxu0
    %1504 = vst [vmem:[#allocation5] sm:$0xff] %v1263
    %1505 = vst [vmem:[#allocation5 + $0x8] sm:$0xff] %v1265
    %1506 = vst [vmem:[#allocation5 + $0x10] sm:$0xff] %v1340
    %1507 = vst [vmem:[#allocation5 + $0x18] sm:$0xff] %v1342
    %1508 = vst [vmem:[#allocation5 + $0x20] sm:$0xff] %v1417
    %1509 = vst [vmem:[#allocation5 + $0x28] sm:$0xff] %v1419
    %1510 = vst [vmem:[#allocation5 + $0x30] sm:$0xff] %v1494
    %1511 = vst [vmem:[#allocation5 + $0x38] sm:$0xff] %v1496
    %1512 = vst [vmem:[#allocation5 + $0x40] sm:$0xff] %v1269
    %1513 = vst [vmem:[#allocation5 + $0x48] sm:$0xff] %v1271
    %1514 = vst [vmem:[#allocation5 + $0x50] sm:$0xff] %v1346
    %1515 = vst [vmem:[#allocation5 + $0x58] sm:$0xff] %v1348
    %1516 = vst [vmem:[#allocation5 + $0x60] sm:$0xff] %v1423
    %1517 = vst [vmem:[#allocation5 + $0x68] sm:$0xff] %v1425
    %1518 = vst [vmem:[#allocation5 + $0x70] sm:$0xff] %v1500
    %1519 = vst [vmem:[#allocation5 + $0x78] sm:$0xff] %v1502
    // Predicated region
    $region46: #{tpu_custom_call.1} parent=1 // pred_check
      _
    $region47: #{tpu_custom_call.1} parent=1 // pred_check_branch
      %1521 = sbr.rel (0) target = $region49
    $region48: #{tpu_custom_call.1} parent=1 // pred_region
      %s1523 = ssub.s32 2048, 2048
      %1524 = vsyncadd [#allocation4], %s1523
      %s1525 = sshll.u32 [#allocation5], 4
      %s1526 = int_to_ptr.vmem [resolvable:$true] %s1525
      %1531 = dma.vmem_to_hbm [thread:$0]  %s1526, 2048, %s10, [#allocation4], 1024, 1024, 64
    $region49: #{tpu_custom_call.1} parent=1 // pred_fallthru
      _
    // Predicated region
    $region50: #{tpu_custom_call.1} parent=1 // pred_check
      _
    $region51: #{tpu_custom_call.1} parent=1 // pred_check_branch
      %1533 = sbr.rel (0) target = $region53
    $region52: #{tpu_custom_call.1} parent=1 // pred_region
      %1534 = dma.done [#allocation4], 2048
    $region53: #{tpu_custom_call.1} parent=1 // pred_fallthru
      _
    %1535 = vsyncpa [#allocation3], 1
    %1536 = vsyncpa [#allocation4], 1

</llo_original>
